<compile_context>
chip_gen: v5e
topology: v5e:2x2
jax: 0.10.0
libtpu: 0.0.40
codegen_flags: <defaults>
</compile_context>

<pallas_src>
import jax
import jax.numpy as jnp
from jax import lax
from jax.experimental import pallas as pl
from jax.experimental.pallas import tpu as pltpu

EPS = 1e-5  # PyTorch InstanceNorm2d default eps


def _round_up(v, m):
    return ((v + m - 1) // m) * m


def residual_block(x, w1, w2, g1, b1, g2, b2, *,
                   matmul_dtype=jnp.float32,
                   images_per_step=1,
                   single_tensorcore=False):
    """x: (N, C, H, W) f32. w{1,2}: (C, C, 3, 3). g/b: (C,)."""
    N, C, H, W = x.shape
    HW = H * W
    Nb = images_per_step
    assert N % Nb == 0, "images_per_step must divide the batch size"

    # Flat-padded slab geometry: interior at lane offset B (128-aligned).
    # Only >= W lanes of halo are ever read (the +/-1 lane shift is pre-baked).
    ZW = max(128, _round_up(W, 128))
    B = ZW
    L = B + HW + ZW

    # Lane-dense input layout (free reshape on contiguous NCHW data).
    xf = x.reshape(N, C, HW)
    # (Cout, Cin, ky, kx) -> (Cout, ky, kx, Cin) -> (Cout, 9*Cin); column order
    # (ky*3 + kx)*C + ci matches the [left | center | right] row blocks of the
    # scratch slab within each ky chunk.
    w1k = jnp.transpose(w1, (0, 2, 3, 1)).reshape(C, 9 * C).astype(matmul_dtype)
    w2k = jnp.transpose(w2, (0, 2, 3, 1)).reshape(C, 9 * C).astype(matmul_dtype)
    g1c = g1.reshape(C, 1).astype(jnp.float32)
    b1c = b1.reshape(C, 1).astype(jnp.float32)
    g2c = g2.reshape(C, 1).astype(jnp.float32)
    b2c = b2.reshape(C, 1).astype(jnp.float32)
    # Column-validity masks (flat HW layout), built once on the host and
    # passed as a constant-index input.
    col = jnp.arange(HW, dtype=jnp.int32) % W
    masks = jnp.stack([(col != 0), (col != W - 1)]).astype(matmul_dtype)  # (2,HW)

    def kernel(x_ref, w1_ref, w2_ref, g1_ref, b1_ref, g2_ref, b2_ref,
               m_ref, o_ref, buf_ref):
        # x_ref/o_ref: (Nb, C, HW).  w refs: (C, 9C).  g/b: (C, 1).  m_ref: (2, HW).
        # buf_ref: (3C, L) pre-shifted + pre-masked slab;
        #   rows [0,C)=left-neighbor (dx=0), [C,2C)=center (dx=1),
        #   [2C,3C)=right-neighbor (dx=2); image interior at lanes [B, B+HW).

        def zero_halos():
            buf_ref[:, 0:B] = jnp.zeros((3 * C, B), matmul_dtype)
            buf_ref[:, B + HW:L] = jnp.zeros((3 * C, L - B - HW), matmul_dtype)

        if single_tensorcore:
            # Halos are never written afterwards and the scratch persists
            # across the sequential ("arbitrary") grid -> zero only once.
            @pl.when(pl.program_id(0) == 0)
            def _():
                zero_halos()
        else:
            # Megacore-safe (per-core scratch); minimal halo regions only.
            zero_halos()

        mask_l = m_ref[0:1, :]   # (1, HW): column x-1 valid
        mask_r = m_ref[1:2, :]   # (1, HW): column x+1 valid

        def load_slab(v):
            # v: (C, HW) matmul_dtype.  Aligned interior stores; the +/-1 lane
            # shift and the column masks are baked in here ONCE per conv.
            buf_ref[C:2 * C, B:B + HW] = v
            buf_ref[0:C, B:B + HW] = (
                buf_ref[C:2 * C, B - 1:B - 1 + HW] * mask_l)
            buf_ref[2 * C:3 * C, B:B + HW] = (
                buf_ref[C:2 * C, B + 1:B + 1 + HW] * mask_r)

        def conv3x3(w_ref):
            # Three accumulating MXU matmuls (one per ky); no im2col copy.
            acc = None
            for ky in range(3):
                off = B + (ky - 1) * W
                p_ky = buf_ref[:, off:off + HW]                 # (3C, HW)
                w_ky = w_ref[:, ky * 3 * C:(ky + 1) * 3 * C]    # (C, 3C)
                part = jnp.dot(w_ky, p_ky,
                               preferred_element_type=jnp.float32)
                acc = part if acc is None else acc + part
            return acc                                          # (C, HW) f32

        def instance_norm(h, g_ref, b_ref):
            # Biased variance, eps=1e-5 (matches InstanceNorm2d).  Per-channel
            # scale/shift so the (C, HW) epilogue is 2 VPU ops/element.
            inv_hw = 1.0 / HW
            mean = jnp.sum(h, axis=-1, keepdims=True) * inv_hw
            var = jnp.sum(h * h, axis=-1, keepdims=True) * inv_hw - mean * mean
            scale = g_ref[...] * lax.rsqrt(var + EPS)
            shift = b_ref[...] - mean * scale
            return h * scale + shift

        for b in range(Nb):
            # conv1 -> IN1 -> ReLU
            load_slab(x_ref[b].astype(matmul_dtype))
            h = jnp.maximum(instance_norm(conv3x3(w1_ref), g1_ref, b1_ref), 0.0)
            # conv2 -> IN2
            load_slab(h.astype(matmul_dtype))
            h = instance_norm(conv3x3(w2_ref), g2_ref, b2_ref)
            # residual add: re-read x_ref[b] (no (C,HW) value kept live across
            # both convs); lane-dense output store.
            o_ref[b] = (x_ref[b] + h).astype(o_ref.dtype)

    grid_spec = pltpu.PrefetchScalarGridSpec(
        num_scalar_prefetch=0,
        grid=(N // Nb,),
        in_specs=[
            pl.BlockSpec((Nb, C, HW), lambda n: (n, 0, 0)),
            pl.BlockSpec((C, 9 * C), lambda n: (0, 0)),
            pl.BlockSpec((C, 9 * C), lambda n: (0, 0)),
            pl.BlockSpec((C, 1), lambda n: (0, 0)),
            pl.BlockSpec((C, 1), lambda n: (0, 0)),
            pl.BlockSpec((C, 1), lambda n: (0, 0)),
            pl.BlockSpec((C, 1), lambda n: (0, 0)),
            pl.BlockSpec((2, HW), lambda n: (0, 0)),
        ],
        out_specs=pl.BlockSpec((Nb, C, HW), lambda n: (n, 0, 0)),
        scratch_shapes=[pltpu.VMEM((3 * C, L), matmul_dtype)],
    )
    out = pl.pallas_call(
        kernel,
        out_shape=jax.ShapeDtypeStruct((N, C, HW), x.dtype),
        grid_spec=grid_spec,
        compiler_params=pltpu.CompilerParams(
            dimension_semantics=(
                "arbitrary" if single_tensorcore else "parallel",)),
    )(xf, w1k, w2k, g1c, b1c, g2c, b2c, masks)
    return out.reshape(N, C, H, W)


def reference_forward(x, w1, w2, g1, b1, g2, b2):
    """Pure-JAX reference matching the PyTorch module."""
    def conv(h, w):
        return lax.conv_general_dilated(
            h, w, window_strides=(1, 1), padding="SAME",
            dimension_numbers=("NCHW", "OIHW", "NCHW"))

    def inorm(h, g, b):
        mean = h.mean(axis=(2, 3), keepdims=True)
        var = ((h - mean) ** 2).mean(axis=(2, 3), keepdims=True)
        hn = (h - mean) * lax.rsqrt(var + EPS)
        return hn * g.reshape(1, -1, 1, 1) + b.reshape(1, -1, 1, 1)

    h = jnp.maximum(inorm(conv(x, w1), g1, b1), 0.0)
    h = inorm(conv(h, w2), g2, b2)
    return x + h


if __name__ == "__main__":
    # dim_in == dim_out (required for the residual add in the PyTorch module)
    N, C, H, W = 2, 8, 16, 16
    key = jax.random.PRNGKey(0)
    kx, kw1, kw2, kg1, kb1, kg2, kb2 = jax.random.split(key, 7)

    x = jax.random.normal(kx, (N, C, H, W), dtype=jnp.float32)
    w1 = 0.1 * jax.random.normal(kw1, (C, C, 3, 3), dtype=jnp.float32)
    w2 = 0.1 * jax.random.normal(kw2, (C, C, 3, 3), dtype=jnp.float32)
    # InstanceNorm2d(affine=True) params (perturbed so the affine path is used).
    g1 = 1.0 + 0.1 * jax.random.normal(kg1, (C,), dtype=jnp.float32)
    b1 = 0.1 * jax.random.normal(kb1, (C,), dtype=jnp.float32)
    g2 = 1.0 + 0.1 * jax.random.normal(kg2, (C,), dtype=jnp.float32)
    b2 = 0.1 * jax.random.normal(kb2, (C,), dtype=jnp.float32)

    ref = jax.block_until_ready(reference_forward(x, w1, w2, g1, b1, g2, b2))

    # 1) Default path: f32 matmuls, 2 images per grid step (megacore-safe).
    out = jax.block_until_ready(
        residual_block(x, w1, w2, g1, b1, g2, b2, images_per_step=2))
    assert out.shape == (N, C, H, W) and out.dtype == jnp.float32
    assert jnp.allclose(out, ref, atol=1e-4, rtol=1e-4), (
        float(jnp.max(jnp.abs(out - ref))))

    # 2) bf16 matmul path (MXU-native rate, f32 accumulation); looser tolerance.
    out_bf16 = jax.block_until_ready(
        residual_block(x, w1, w2, g1, b1, g2, b2,
                       matmul_dtype=jnp.bfloat16, images_per_step=2))
    assert jnp.allclose(out_bf16, ref, atol=5e-2, rtol=5e-2), (
        float(jnp.max(jnp.abs(out_bf16 - ref))))

    # 3) Single-TensorCore mode (v5e/v6e): halo zeroing hoisted to step 0,
    #    exercised across two sequential grid steps.
    out_stc = jax.block_until_ready(
        residual_block(x, w1, w2, g1, b1, g2, b2,
                       images_per_step=1, single_tensorcore=True))
    assert jnp.allclose(out_stc, ref, atol=1e-4, rtol=1e-4), (
        float(jnp.max(jnp.abs(out_stc - ref))))

    print("KERNEL_OK")
</pallas_src>

<mosaic_0001>
module attributes {stable_mosaic.version = 11 : i64} {
  func.func @kernel(%arg0: i32, %arg1: memref<2x8x256xf32, #tpu.memory_space<vmem>>, %arg2: memref<8x72xf32, #tpu.memory_space<vmem>>, %arg3: memref<8x72xf32, #tpu.memory_space<vmem>>, %arg4: memref<8x1xf32, #tpu.memory_space<vmem>>, %arg5: memref<8x1xf32, #tpu.memory_space<vmem>>, %arg6: memref<8x1xf32, #tpu.memory_space<vmem>>, %arg7: memref<8x1xf32, #tpu.memory_space<vmem>>, %arg8: memref<2x256xf32, #tpu.memory_space<vmem>>, %arg9: memref<2x8x256xf32, #tpu.memory_space<vmem>>, %arg10: memref<24x512xf32, #tpu.memory_space<vmem>>) attributes {dimension_semantics = [#tpu.dimension_semantics<parallel>], iteration_bounds = array<i64: 1>, scalar_prefetch = 0 : i64, scratch_operands = 1 : i64, tpu.core_type = #tpu.core_type<tc>, window_params = [{transform_indices = @transform_0, window_bounds = array<i64: 2, 8, 256>}, {pipeline_mode = #tpu.pipeline_mode<synchronous>, transform_indices = @transform_1, window_bounds = array<i64: 8, 72>}, {pipeline_mode = #tpu.pipeline_mode<synchronous>, transform_indices = @transform_2, window_bounds = array<i64: 8, 72>}, {pipeline_mode = #tpu.pipeline_mode<synchronous>, transform_indices = @transform_3, window_bounds = array<i64: 8, 1>}, {pipeline_mode = #tpu.pipeline_mode<synchronous>, transform_indices = @transform_4, window_bounds = array<i64: 8, 1>}, {pipeline_mode = #tpu.pipeline_mode<synchronous>, transform_indices = @transform_5, window_bounds = array<i64: 8, 1>}, {pipeline_mode = #tpu.pipeline_mode<synchronous>, transform_indices = @transform_6, window_bounds = array<i64: 8, 1>}, {pipeline_mode = #tpu.pipeline_mode<synchronous>, transform_indices = @transform_7, window_bounds = array<i64: 2, 256>}, {transform_indices = @transform_8, window_bounds = array<i64: 2, 8, 256>}]} {
    %cst = arith.constant 0.000000e+00 : f32
    %0 = vector.broadcast %cst : f32 to vector<24x128xf32>
    %c0 = arith.constant 0 : index
    %c0_0 = arith.constant 0 : index
    %1 = vector.load %arg10[%c0, %c0_0] : memref<24x512xf32, #tpu.memory_space<vmem>>, vector<24x128xf32>
    tpu.vector_store %arg10[%c0, %c0_0], %0 {strides = array<i32>} : memref<24x512xf32, #tpu.memory_space<vmem>>, vector<24x128xf32>,
    %cst_1 = arith.constant 0.000000e+00 : f32
    %2 = vector.broadcast %cst_1 : f32 to vector<24x128xf32>
    %c0_2 = arith.constant 0 : index
    %c384 = arith.constant 384 : index
    %3 = vector.load %arg10[%c0_2, %c384] : memref<24x512xf32, #tpu.memory_space<vmem>>, vector<24x128xf32>
    tpu.vector_store %arg10[%c0_2, %c384], %2 {strides = array<i32>} : memref<24x512xf32, #tpu.memory_space<vmem>>, vector<24x128xf32>,
    %c0_3 = arith.constant 0 : index
    %c0_4 = arith.constant 0 : index
    %4 = vector.load %arg8[%c0_3, %c0_4] : memref<2x256xf32, #tpu.memory_space<vmem>>, vector<1x256xf32>
    %c1 = arith.constant 1 : index
    %c0_5 = arith.constant 0 : index
    %5 = vector.load %arg8[%c1, %c0_5] : memref<2x256xf32, #tpu.memory_space<vmem>>, vector<1x256xf32>
    %c0_6 = arith.constant 0 : index
    %c0_7 = arith.constant 0 : index
    %c0_8 = arith.constant 0 : index
    %6 = vector.load %arg1[%c0_6, %c0_7, %c0_8] : memref<2x8x256xf32, #tpu.memory_space<vmem>>, vector<1x8x256xf32>
    %7 = vector.shape_cast %6 : vector<1x8x256xf32> to vector<8x256xf32>
    %c8 = arith.constant 8 : index
    %c128 = arith.constant 128 : index
    %8 = vector.load %arg10[%c8, %c128] : memref<24x512xf32, #tpu.memory_space<vmem>>, vector<8x256xf32>
    tpu.vector_store %arg10[%c8, %c128], %7 {strides = array<i32>} : memref<24x512xf32, #tpu.memory_space<vmem>>, vector<8x256xf32>,
    %c8_9 = arith.constant 8 : index
    %c127 = arith.constant 127 : index
    %9 = vector.load %arg10[%c8_9, %c127] : memref<24x512xf32, #tpu.memory_space<vmem>>, vector<8x256xf32>
    %10 = vector.broadcast %4 : vector<1x256xf32> to vector<8x256xf32>
    %11 = arith.mulf %9, %10 : vector<8x256xf32>
    %c0_10 = arith.constant 0 : index
    %c128_11 = arith.constant 128 : index
    %12 = vector.load %arg10[%c0_10, %c128_11] : memref<24x512xf32, #tpu.memory_space<vmem>>, vector<8x256xf32>
    tpu.vector_store %arg10[%c0_10, %c128_11], %11 {strides = array<i32>} : memref<24x512xf32, #tpu.memory_space<vmem>>, vector<8x256xf32>,
    %c8_12 = arith.constant 8 : index
    %c129 = arith.constant 129 : index
    %13 = vector.load %arg10[%c8_12, %c129] : memref<24x512xf32, #tpu.memory_space<vmem>>, vector<8x256xf32>
    %14 = vector.broadcast %5 : vector<1x256xf32> to vector<8x256xf32>
    %15 = arith.mulf %13, %14 : vector<8x256xf32>
    %c16 = arith.constant 16 : index
    %c128_13 = arith.constant 128 : index
    %16 = vector.load %arg10[%c16, %c128_13] : memref<24x512xf32, #tpu.memory_space<vmem>>, vector<8x256xf32>
    tpu.vector_store %arg10[%c16, %c128_13], %15 {strides = array<i32>} : memref<24x512xf32, #tpu.memory_space<vmem>>, vector<8x256xf32>,
    %c0_14 = arith.constant 0 : index
    %c112 = arith.constant 112 : index
    %17 = vector.load %arg10[%c0_14, %c112] : memref<24x512xf32, #tpu.memory_space<vmem>>, vector<24x256xf32>
    %c0_15 = arith.constant 0 : index
    %c0_16 = arith.constant 0 : index
    %18 = vector.load %arg2[%c0_15, %c0_16] : memref<8x72xf32, #tpu.memory_space<vmem>>, vector<8x24xf32>
    %cst_17 = arith.constant dense<0.000000e+00> : vector<8x256xf32>
    %19 = tpu.matmul %18, %17, %cst_17 {dimension_numbers = #tpu.dot_dimension_numbers<[1], [0], [0], [1], [0, 0, 1, 1], [], []>} : vector<8x24xf32>, vector<24x256xf32>, vector<8x256xf32> -> vector<8x256xf32>
    %c0_18 = arith.constant 0 : index
    %c128_19 = arith.constant 128 : index
    %20 = vector.load %arg10[%c0_18, %c128_19] : memref<24x512xf32, #tpu.memory_space<vmem>>, vector<24x256xf32>
    %c0_20 = arith.constant 0 : index
    %c24 = arith.constant 24 : index
    %21 = vector.load %arg2[%c0_20, %c24] : memref<8x72xf32, #tpu.memory_space<vmem>>, vector<8x24xf32>
    %cst_21 = arith.constant dense<0.000000e+00> : vector<8x256xf32>
    %22 = tpu.matmul %21, %20, %cst_21 {dimension_numbers = #tpu.dot_dimension_numbers<[1], [0], [0], [1], [0, 0, 1, 1], [], []>} : vector<8x24xf32>, vector<24x256xf32>, vector<8x256xf32> -> vector<8x256xf32>
    %23 = arith.addf %19, %22 : vector<8x256xf32>
    %c0_22 = arith.constant 0 : index
    %c144 = arith.constant 144 : index
    %24 = vector.load %arg10[%c0_22, %c144] : memref<24x512xf32, #tpu.memory_space<vmem>>, vector<24x256xf32>
    %c0_23 = arith.constant 0 : index
    %c48 = arith.constant 48 : index
    %25 = vector.load %arg2[%c0_23, %c48] : memref<8x72xf32, #tpu.memory_space<vmem>>, vector<8x24xf32>
    %cst_24 = arith.constant dense<0.000000e+00> : vector<8x256xf32>
    %26 = tpu.matmul %25, %24, %cst_24 {dimension_numbers = #tpu.dot_dimension_numbers<[1], [0], [0], [1], [0, 0, 1, 1], [], []>} : vector<8x24xf32>, vector<24x256xf32>, vector<8x256xf32> -> vector<8x256xf32>
    %27 = arith.addf %23, %26 : vector<8x256xf32>
    %cst_25 = arith.constant dense<0.000000e+00> : vector<8xf32>
    %28 = vector.multi_reduction <add>, %27, %cst_25 [1] : vector<8x256xf32> to vector<8xf32>
    %29 = vector.shape_cast %28 : vector<8xf32> to vector<8x1xf32>
    %cst_26 = arith.constant 3.906250e-03 : f32
    %30 = vector.broadcast %cst_26 : f32 to vector<8x1xf32>
    %31 = arith.mulf %29, %30 : vector<8x1xf32>
    %32 = arith.mulf %27, %27 : vector<8x256xf32>
    %cst_27 = arith.constant dense<0.000000e+00> : vector<8xf32>
    %33 = vector.multi_reduction <add>, %32, %cst_27 [1] : vector<8x256xf32> to vector<8xf32>
    %34 = vector.shape_cast %33 : vector<8xf32> to vector<8x1xf32>
    %cst_28 = arith.constant 3.906250e-03 : f32
    %35 = vector.broadcast %cst_28 : f32 to vector<8x1xf32>
    %36 = arith.mulf %34, %35 : vector<8x1xf32>
    %37 = arith.mulf %31, %31 : vector<8x1xf32>
    %38 = arith.subf %36, %37 : vector<8x1xf32>
    %c0_29 = arith.constant 0 : index
    %c0_30 = arith.constant 0 : index
    %39 = vector.load %arg4[%c0_29, %c0_30] : memref<8x1xf32, #tpu.memory_space<vmem>>, vector<8x1xf32>
    %cst_31 = arith.constant 9.99999974E-6 : f32
    %40 = vector.broadcast %cst_31 : f32 to vector<8x1xf32>
    %41 = arith.addf %38, %40 : vector<8x1xf32>
    %42 = math.rsqrt %41 : vector<8x1xf32>
    %43 = arith.mulf %39, %42 : vector<8x1xf32>
    %c0_32 = arith.constant 0 : index
    %c0_33 = arith.constant 0 : index
    %44 = vector.load %arg5[%c0_32, %c0_33] : memref<8x1xf32, #tpu.memory_space<vmem>>, vector<8x1xf32>
    %45 = arith.mulf %31, %43 : vector<8x1xf32>
    %46 = arith.subf %44, %45 : vector<8x1xf32>
    %47 = vector.broadcast %43 : vector<8x1xf32> to vector<8x256xf32>
    %48 = arith.mulf %27, %47 : vector<8x256xf32>
    %49 = vector.broadcast %46 : vector<8x1xf32> to vector<8x256xf32>
    %50 = arith.addf %48, %49 : vector<8x256xf32>
    %cst_34 = arith.constant 0.000000e+00 : f32
    %51 = vector.broadcast %cst_34 : f32 to vector<8x256xf32>
    %52 = arith.maximumf %50, %51 : vector<8x256xf32>
    %c8_35 = arith.constant 8 : index
    %c128_36 = arith.constant 128 : index
    %53 = vector.load %arg10[%c8_35, %c128_36] : memref<24x512xf32, #tpu.memory_space<vmem>>, vector<8x256xf32>
    tpu.vector_store %arg10[%c8_35, %c128_36], %52 {strides = array<i32>} : memref<24x512xf32, #tpu.memory_space<vmem>>, vector<8x256xf32>,
    %c8_37 = arith.constant 8 : index
    %c127_38 = arith.constant 127 : index
    %54 = vector.load %arg10[%c8_37, %c127_38] : memref<24x512xf32, #tpu.memory_space<vmem>>, vector<8x256xf32>
    %55 = vector.broadcast %4 : vector<1x256xf32> to vector<8x256xf32>
    %56 = arith.mulf %54, %55 : vector<8x256xf32>
    %c0_39 = arith.constant 0 : index
    %c128_40 = arith.constant 128 : index
    %57 = vector.load %arg10[%c0_39, %c128_40] : memref<24x512xf32, #tpu.memory_space<vmem>>, vector<8x256xf32>
    tpu.vector_store %arg10[%c0_39, %c128_40], %56 {strides = array<i32>} : memref<24x512xf32, #tpu.memory_space<vmem>>, vector<8x256xf32>,
    %c8_41 = arith.constant 8 : index
    %c129_42 = arith.constant 129 : index
    %58 = vector.load %arg10[%c8_41, %c129_42] : memref<24x512xf32, #tpu.memory_space<vmem>>, vector<8x256xf32>
    %59 = vector.broadcast %5 : vector<1x256xf32> to vector<8x256xf32>
    %60 = arith.mulf %58, %59 : vector<8x256xf32>
    %c16_43 = arith.constant 16 : index
    %c128_44 = arith.constant 128 : index
    %61 = vector.load %arg10[%c16_43, %c128_44] : memref<24x512xf32, #tpu.memory_space<vmem>>, vector<8x256xf32>
    tpu.vector_store %arg10[%c16_43, %c128_44], %60 {strides = array<i32>} : memref<24x512xf32, #tpu.memory_space<vmem>>, vector<8x256xf32>,
    %c0_45 = arith.constant 0 : index
    %c112_46 = arith.constant 112 : index
    %62 = vector.load %arg10[%c0_45, %c112_46] : memref<24x512xf32, #tpu.memory_space<vmem>>, vector<24x256xf32>
    %c0_47 = arith.constant 0 : index
    %c0_48 = arith.constant 0 : index
    %63 = vector.load %arg3[%c0_47, %c0_48] : memref<8x72xf32, #tpu.memory_space<vmem>>, vector<8x24xf32>
    %cst_49 = arith.constant dense<0.000000e+00> : vector<8x256xf32>
    %64 = tpu.matmul %63, %62, %cst_49 {dimension_numbers = #tpu.dot_dimension_numbers<[1], [0], [0], [1], [0, 0, 1, 1], [], []>} : vector<8x24xf32>, vector<24x256xf32>, vector<8x256xf32> -> vector<8x256xf32>
    %c0_50 = arith.constant 0 : index
    %c128_51 = arith.constant 128 : index
    %65 = vector.load %arg10[%c0_50, %c128_51] : memref<24x512xf32, #tpu.memory_space<vmem>>, vector<24x256xf32>
    %c0_52 = arith.constant 0 : index
    %c24_53 = arith.constant 24 : index
    %66 = vector.load %arg3[%c0_52, %c24_53] : memref<8x72xf32, #tpu.memory_space<vmem>>, vector<8x24xf32>
    %cst_54 = arith.constant dense<0.000000e+00> : vector<8x256xf32>
    %67 = tpu.matmul %66, %65, %cst_54 {dimension_numbers = #tpu.dot_dimension_numbers<[1], [0], [0], [1], [0, 0, 1, 1], [], []>} : vector<8x24xf32>, vector<24x256xf32>, vector<8x256xf32> -> vector<8x256xf32>
    %68 = arith.addf %64, %67 : vector<8x256xf32>
    %c0_55 = arith.constant 0 : index
    %c144_56 = arith.constant 144 : index
    %69 = vector.load %arg10[%c0_55, %c144_56] : memref<24x512xf32, #tpu.memory_space<vmem>>, vector<24x256xf32>
    %c0_57 = arith.constant 0 : index
    %c48_58 = arith.constant 48 : index
    %70 = vector.load %arg3[%c0_57, %c48_58] : memref<8x72xf32, #tpu.memory_space<vmem>>, vector<8x24xf32>
    %cst_59 = arith.constant dense<0.000000e+00> : vector<8x256xf32>
    %71 = tpu.matmul %70, %69, %cst_59 {dimension_numbers = #tpu.dot_dimension_numbers<[1], [0], [0], [1], [0, 0, 1, 1], [], []>} : vector<8x24xf32>, vector<24x256xf32>, vector<8x256xf32> -> vector<8x256xf32>
    %72 = arith.addf %68, %71 : vector<8x256xf32>
    %cst_60 = arith.constant dense<0.000000e+00> : vector<8xf32>
    %73 = vector.multi_reduction <add>, %72, %cst_60 [1] : vector<8x256xf32> to vector<8xf32>
    %74 = vector.shape_cast %73 : vector<8xf32> to vector<8x1xf32>
    %cst_61 = arith.constant 3.906250e-03 : f32
    %75 = vector.broadcast %cst_61 : f32 to vector<8x1xf32>
    %76 = arith.mulf %74, %75 : vector<8x1xf32>
    %77 = arith.mulf %72, %72 : vector<8x256xf32>
    %cst_62 = arith.constant dense<0.000000e+00> : vector<8xf32>
    %78 = vector.multi_reduction <add>, %77, %cst_62 [1] : vector<8x256xf32> to vector<8xf32>
    %79 = vector.shape_cast %78 : vector<8xf32> to vector<8x1xf32>
    %cst_63 = arith.constant 3.906250e-03 : f32
    %80 = vector.broadcast %cst_63 : f32 to vector<8x1xf32>
    %81 = arith.mulf %79, %80 : vector<8x1xf32>
    %82 = arith.mulf %76, %76 : vector<8x1xf32>
    %83 = arith.subf %81, %82 : vector<8x1xf32>
    %c0_64 = arith.constant 0 : index
    %c0_65 = arith.constant 0 : index
    %84 = vector.load %arg6[%c0_64, %c0_65] : memref<8x1xf32, #tpu.memory_space<vmem>>, vector<8x1xf32>
    %cst_66 = arith.constant 9.99999974E-6 : f32
    %85 = vector.broadcast %cst_66 : f32 to vector<8x1xf32>
    %86 = arith.addf %83, %85 : vector<8x1xf32>
    %87 = math.rsqrt %86 : vector<8x1xf32>
    %88 = arith.mulf %84, %87 : vector<8x1xf32>
    %c0_67 = arith.constant 0 : index
    %c0_68 = arith.constant 0 : index
    %89 = vector.load %arg7[%c0_67, %c0_68] : memref<8x1xf32, #tpu.memory_space<vmem>>, vector<8x1xf32>
    %90 = arith.mulf %76, %88 : vector<8x1xf32>
    %91 = arith.subf %89, %90 : vector<8x1xf32>
    %92 = vector.broadcast %88 : vector<8x1xf32> to vector<8x256xf32>
    %93 = arith.mulf %72, %92 : vector<8x256xf32>
    %94 = vector.broadcast %91 : vector<8x1xf32> to vector<8x256xf32>
    %95 = arith.addf %93, %94 : vector<8x256xf32>
    %c0_69 = arith.constant 0 : index
    %c0_70 = arith.constant 0 : index
    %c0_71 = arith.constant 0 : index
    %96 = vector.load %arg1[%c0_69, %c0_70, %c0_71] : memref<2x8x256xf32, #tpu.memory_space<vmem>>, vector<1x8x256xf32>
    %97 = vector.shape_cast %96 : vector<1x8x256xf32> to vector<8x256xf32>
    %98 = arith.addf %97, %95 : vector<8x256xf32>
    %c0_72 = arith.constant 0 : index
    %c0_73 = arith.constant 0 : index
    %c0_74 = arith.constant 0 : index
    %99 = vector.load %arg9[%c0_72, %c0_73, %c0_74] : memref<2x8x256xf32, #tpu.memory_space<vmem>>, vector<1x8x256xf32>
    %100 = vector.shape_cast %99 : vector<1x8x256xf32> to vector<8x256xf32>
    %101 = vector.shape_cast %98 : vector<8x256xf32> to vector<1x8x256xf32>
    tpu.vector_store %arg9[%c0_72, %c0_73, %c0_74], %101 {strides = array<i32>} : memref<2x8x256xf32, #tpu.memory_space<vmem>>, vector<1x8x256xf32>,
    %c1_75 = arith.constant 1 : index
    %c0_76 = arith.constant 0 : index
    %c0_77 = arith.constant 0 : index
    %102 = vector.load %arg1[%c1_75, %c0_76, %c0_77] : memref<2x8x256xf32, #tpu.memory_space<vmem>>, vector<1x8x256xf32>
    %103 = vector.shape_cast %102 : vector<1x8x256xf32> to vector<8x256xf32>
    %c8_78 = arith.constant 8 : index
    %c128_79 = arith.constant 128 : index
    %104 = vector.load %arg10[%c8_78, %c128_79] : memref<24x512xf32, #tpu.memory_space<vmem>>, vector<8x256xf32>
    tpu.vector_store %arg10[%c8_78, %c128_79], %103 {strides = array<i32>} : memref<24x512xf32, #tpu.memory_space<vmem>>, vector<8x256xf32>,
    %c8_80 = arith.constant 8 : index
    %c127_81 = arith.constant 127 : index
    %105 = vector.load %arg10[%c8_80, %c127_81] : memref<24x512xf32, #tpu.memory_space<vmem>>, vector<8x256xf32>
    %106 = vector.broadcast %4 : vector<1x256xf32> to vector<8x256xf32>
    %107 = arith.mulf %105, %106 : vector<8x256xf32>
    %c0_82 = arith.constant 0 : index
    %c128_83 = arith.constant 128 : index
    %108 = vector.load %arg10[%c0_82, %c128_83] : memref<24x512xf32, #tpu.memory_space<vmem>>, vector<8x256xf32>
    tpu.vector_store %arg10[%c0_82, %c128_83], %107 {strides = array<i32>} : memref<24x512xf32, #tpu.memory_space<vmem>>, vector<8x256xf32>,
    %c8_84 = arith.constant 8 : index
    %c129_85 = arith.constant 129 : index
    %109 = vector.load %arg10[%c8_84, %c129_85] : memref<24x512xf32, #tpu.memory_space<vmem>>, vector<8x256xf32>
    %110 = vector.broadcast %5 : vector<1x256xf32> to vector<8x256xf32>
    %111 = arith.mulf %109, %110 : vector<8x256xf32>
    %c16_86 = arith.constant 16 : index
    %c128_87 = arith.constant 128 : index
    %112 = vector.load %arg10[%c16_86, %c128_87] : memref<24x512xf32, #tpu.memory_space<vmem>>, vector<8x256xf32>
    tpu.vector_store %arg10[%c16_86, %c128_87], %111 {strides = array<i32>} : memref<24x512xf32, #tpu.memory_space<vmem>>, vector<8x256xf32>,
    %c0_88 = arith.constant 0 : index
    %c112_89 = arith.constant 112 : index
    %113 = vector.load %arg10[%c0_88, %c112_89] : memref<24x512xf32, #tpu.memory_space<vmem>>, vector<24x256xf32>
    %c0_90 = arith.constant 0 : index
    %c0_91 = arith.constant 0 : index
    %114 = vector.load %arg2[%c0_90, %c0_91] : memref<8x72xf32, #tpu.memory_space<vmem>>, vector<8x24xf32>
    %cst_92 = arith.constant dense<0.000000e+00> : vector<8x256xf32>
    %115 = tpu.matmul %114, %113, %cst_92 {dimension_numbers = #tpu.dot_dimension_numbers<[1], [0], [0], [1], [0, 0, 1, 1], [], []>} : vector<8x24xf32>, vector<24x256xf32>, vector<8x256xf32> -> vector<8x256xf32>
    %c0_93 = arith.constant 0 : index
    %c128_94 = arith.constant 128 : index
    %116 = vector.load %arg10[%c0_93, %c128_94] : memref<24x512xf32, #tpu.memory_space<vmem>>, vector<24x256xf32>
    %c0_95 = arith.constant 0 : index
    %c24_96 = arith.constant 24 : index
    %117 = vector.load %arg2[%c0_95, %c24_96] : memref<8x72xf32, #tpu.memory_space<vmem>>, vector<8x24xf32>
    %cst_97 = arith.constant dense<0.000000e+00> : vector<8x256xf32>
    %118 = tpu.matmul %117, %116, %cst_97 {dimension_numbers = #tpu.dot_dimension_numbers<[1], [0], [0], [1], [0, 0, 1, 1], [], []>} : vector<8x24xf32>, vector<24x256xf32>, vector<8x256xf32> -> vector<8x256xf32>
    %119 = arith.addf %115, %118 : vector<8x256xf32>
    %c0_98 = arith.constant 0 : index
    %c144_99 = arith.constant 144 : index
    %120 = vector.load %arg10[%c0_98, %c144_99] : memref<24x512xf32, #tpu.memory_space<vmem>>, vector<24x256xf32>
    %c0_100 = arith.constant 0 : index
    %c48_101 = arith.constant 48 : index
    %121 = vector.load %arg2[%c0_100, %c48_101] : memref<8x72xf32, #tpu.memory_space<vmem>>, vector<8x24xf32>
    %cst_102 = arith.constant dense<0.000000e+00> : vector<8x256xf32>
    %122 = tpu.matmul %121, %120, %cst_102 {dimension_numbers = #tpu.dot_dimension_numbers<[1], [0], [0], [1], [0, 0, 1, 1], [], []>} : vector<8x24xf32>, vector<24x256xf32>, vector<8x256xf32> -> vector<8x256xf32>
    %123 = arith.addf %119, %122 : vector<8x256xf32>
    %cst_103 = arith.constant dense<0.000000e+00> : vector<8xf32>
    %124 = vector.multi_reduction <add>, %123, %cst_103 [1] : vector<8x256xf32> to vector<8xf32>
    %125 = vector.shape_cast %124 : vector<8xf32> to vector<8x1xf32>
    %cst_104 = arith.constant 3.906250e-03 : f32
    %126 = vector.broadcast %cst_104 : f32 to vector<8x1xf32>
    %127 = arith.mulf %125, %126 : vector<8x1xf32>
    %128 = arith.mulf %123, %123 : vector<8x256xf32>
    %cst_105 = arith.constant dense<0.000000e+00> : vector<8xf32>
    %129 = vector.multi_reduction <add>, %128, %cst_105 [1] : vector<8x256xf32> to vector<8xf32>
    %130 = vector.shape_cast %129 : vector<8xf32> to vector<8x1xf32>
    %cst_106 = arith.constant 3.906250e-03 : f32
    %131 = vector.broadcast %cst_106 : f32 to vector<8x1xf32>
    %132 = arith.mulf %130, %131 : vector<8x1xf32>
    %133 = arith.mulf %127, %127 : vector<8x1xf32>
    %134 = arith.subf %132, %133 : vector<8x1xf32>
    %c0_107 = arith.constant 0 : index
    %c0_108 = arith.constant 0 : index
    %135 = vector.load %arg4[%c0_107, %c0_108] : memref<8x1xf32, #tpu.memory_space<vmem>>, vector<8x1xf32>
    %cst_109 = arith.constant 9.99999974E-6 : f32
    %136 = vector.broadcast %cst_109 : f32 to vector<8x1xf32>
    %137 = arith.addf %134, %136 : vector<8x1xf32>
    %138 = math.rsqrt %137 : vector<8x1xf32>
    %139 = arith.mulf %135, %138 : vector<8x1xf32>
    %c0_110 = arith.constant 0 : index
    %c0_111 = arith.constant 0 : index
    %140 = vector.load %arg5[%c0_110, %c0_111] : memref<8x1xf32, #tpu.memory_space<vmem>>, vector<8x1xf32>
    %141 = arith.mulf %127, %139 : vector<8x1xf32>
    %142 = arith.subf %140, %141 : vector<8x1xf32>
    %143 = vector.broadcast %139 : vector<8x1xf32> to vector<8x256xf32>
    %144 = arith.mulf %123, %143 : vector<8x256xf32>
    %145 = vector.broadcast %142 : vector<8x1xf32> to vector<8x256xf32>
    %146 = arith.addf %144, %145 : vector<8x256xf32>
    %cst_112 = arith.constant 0.000000e+00 : f32
    %147 = vector.broadcast %cst_112 : f32 to vector<8x256xf32>
    %148 = arith.maximumf %146, %147 : vector<8x256xf32>
    %c8_113 = arith.constant 8 : index
    %c128_114 = arith.constant 128 : index
    %149 = vector.load %arg10[%c8_113, %c128_114] : memref<24x512xf32, #tpu.memory_space<vmem>>, vector<8x256xf32>
    tpu.vector_store %arg10[%c8_113, %c128_114], %148 {strides = array<i32>} : memref<24x512xf32, #tpu.memory_space<vmem>>, vector<8x256xf32>,
    %c8_115 = arith.constant 8 : index
    %c127_116 = arith.constant 127 : index
    %150 = vector.load %arg10[%c8_115, %c127_116] : memref<24x512xf32, #tpu.memory_space<vmem>>, vector<8x256xf32>
    %151 = vector.broadcast %4 : vector<1x256xf32> to vector<8x256xf32>
    %152 = arith.mulf %150, %151 : vector<8x256xf32>
    %c0_117 = arith.constant 0 : index
    %c128_118 = arith.constant 128 : index
    %153 = vector.load %arg10[%c0_117, %c128_118] : memref<24x512xf32, #tpu.memory_space<vmem>>, vector<8x256xf32>
    tpu.vector_store %arg10[%c0_117, %c128_118], %152 {strides = array<i32>} : memref<24x512xf32, #tpu.memory_space<vmem>>, vector<8x256xf32>,
    %c8_119 = arith.constant 8 : index
    %c129_120 = arith.constant 129 : index
    %154 = vector.load %arg10[%c8_119, %c129_120] : memref<24x512xf32, #tpu.memory_space<vmem>>, vector<8x256xf32>
    %155 = vector.broadcast %5 : vector<1x256xf32> to vector<8x256xf32>
    %156 = arith.mulf %154, %155 : vector<8x256xf32>
    %c16_121 = arith.constant 16 : index
    %c128_122 = arith.constant 128 : index
    %157 = vector.load %arg10[%c16_121, %c128_122] : memref<24x512xf32, #tpu.memory_space<vmem>>, vector<8x256xf32>
    tpu.vector_store %arg10[%c16_121, %c128_122], %156 {strides = array<i32>} : memref<24x512xf32, #tpu.memory_space<vmem>>, vector<8x256xf32>,
    %c0_123 = arith.constant 0 : index
    %c112_124 = arith.constant 112 : index
    %158 = vector.load %arg10[%c0_123, %c112_124] : memref<24x512xf32, #tpu.memory_space<vmem>>, vector<24x256xf32>
    %c0_125 = arith.constant 0 : index
    %c0_126 = arith.constant 0 : index
    %159 = vector.load %arg3[%c0_125, %c0_126] : memref<8x72xf32, #tpu.memory_space<vmem>>, vector<8x24xf32>
    %cst_127 = arith.constant dense<0.000000e+00> : vector<8x256xf32>
    %160 = tpu.matmul %159, %158, %cst_127 {dimension_numbers = #tpu.dot_dimension_numbers<[1], [0], [0], [1], [0, 0, 1, 1], [], []>} : vector<8x24xf32>, vector<24x256xf32>, vector<8x256xf32> -> vector<8x256xf32>
    %c0_128 = arith.constant 0 : index
    %c128_129 = arith.constant 128 : index
    %161 = vector.load %arg10[%c0_128, %c128_129] : memref<24x512xf32, #tpu.memory_space<vmem>>, vector<24x256xf32>
    %c0_130 = arith.constant 0 : index
    %c24_131 = arith.constant 24 : index
    %162 = vector.load %arg3[%c0_130, %c24_131] : memref<8x72xf32, #tpu.memory_space<vmem>>, vector<8x24xf32>
    %cst_132 = arith.constant dense<0.000000e+00> : vector<8x256xf32>
    %163 = tpu.matmul %162, %161, %cst_132 {dimension_numbers = #tpu.dot_dimension_numbers<[1], [0], [0], [1], [0, 0, 1, 1], [], []>} : vector<8x24xf32>, vector<24x256xf32>, vector<8x256xf32> -> vector<8x256xf32>
    %164 = arith.addf %160, %163 : vector<8x256xf32>
    %c0_133 = arith.constant 0 : index
    %c144_134 = arith.constant 144 : index
    %165 = vector.load %arg10[%c0_133, %c144_134] : memref<24x512xf32, #tpu.memory_space<vmem>>, vector<24x256xf32>
    %c0_135 = arith.constant 0 : index
    %c48_136 = arith.constant 48 : index
    %166 = vector.load %arg3[%c0_135, %c48_136] : memref<8x72xf32, #tpu.memory_space<vmem>>, vector<8x24xf32>
    %cst_137 = arith.constant dense<0.000000e+00> : vector<8x256xf32>
    %167 = tpu.matmul %166, %165, %cst_137 {dimension_numbers = #tpu.dot_dimension_numbers<[1], [0], [0], [1], [0, 0, 1, 1], [], []>} : vector<8x24xf32>, vector<24x256xf32>, vector<8x256xf32> -> vector<8x256xf32>
    %168 = arith.addf %164, %167 : vector<8x256xf32>
    %cst_138 = arith.constant dense<0.000000e+00> : vector<8xf32>
    %169 = vector.multi_reduction <add>, %168, %cst_138 [1] : vector<8x256xf32> to vector<8xf32>
    %170 = vector.shape_cast %169 : vector<8xf32> to vector<8x1xf32>
    %cst_139 = arith.constant 3.906250e-03 : f32
    %171 = vector.broadcast %cst_139 : f32 to vector<8x1xf32>
    %172 = arith.mulf %170, %171 : vector<8x1xf32>
    %173 = arith.mulf %168, %168 : vector<8x256xf32>
    %cst_140 = arith.constant dense<0.000000e+00> : vector<8xf32>
    %174 = vector.multi_reduction <add>, %173, %cst_140 [1] : vector<8x256xf32> to vector<8xf32>
    %175 = vector.shape_cast %174 : vector<8xf32> to vector<8x1xf32>
    %cst_141 = arith.constant 3.906250e-03 : f32
    %176 = vector.broadcast %cst_141 : f32 to vector<8x1xf32>
    %177 = arith.mulf %175, %176 : vector<8x1xf32>
    %178 = arith.mulf %172, %172 : vector<8x1xf32>
    %179 = arith.subf %177, %178 : vector<8x1xf32>
    %c0_142 = arith.constant 0 : index
    %c0_143 = arith.constant 0 : index
    %180 = vector.load %arg6[%c0_142, %c0_143] : memref<8x1xf32, #tpu.memory_space<vmem>>, vector<8x1xf32>
    %cst_144 = arith.constant 9.99999974E-6 : f32
    %181 = vector.broadcast %cst_144 : f32 to vector<8x1xf32>
    %182 = arith.addf %179, %181 : vector<8x1xf32>
    %183 = math.rsqrt %182 : vector<8x1xf32>
    %184 = arith.mulf %180, %183 : vector<8x1xf32>
    %c0_145 = arith.constant 0 : index
    %c0_146 = arith.constant 0 : index
    %185 = vector.load %arg7[%c0_145, %c0_146] : memref<8x1xf32, #tpu.memory_space<vmem>>, vector<8x1xf32>
    %186 = arith.mulf %172, %184 : vector<8x1xf32>
    %187 = arith.subf %185, %186 : vector<8x1xf32>
    %188 = vector.broadcast %184 : vector<8x1xf32> to vector<8x256xf32>
    %189 = arith.mulf %168, %188 : vector<8x256xf32>
    %190 = vector.broadcast %187 : vector<8x1xf32> to vector<8x256xf32>
    %191 = arith.addf %189, %190 : vector<8x256xf32>
    %c1_147 = arith.constant 1 : index
    %c0_148 = arith.constant 0 : index
    %c0_149 = arith.constant 0 : index
    %192 = vector.load %arg1[%c1_147, %c0_148, %c0_149] : memref<2x8x256xf32, #tpu.memory_space<vmem>>, vector<1x8x256xf32>
    %193 = vector.shape_cast %192 : vector<1x8x256xf32> to vector<8x256xf32>
    %194 = arith.addf %193, %191 : vector<8x256xf32>
    %c1_150 = arith.constant 1 : index
    %c0_151 = arith.constant 0 : index
    %c0_152 = arith.constant 0 : index
    %195 = vector.load %arg9[%c1_150, %c0_151, %c0_152] : memref<2x8x256xf32, #tpu.memory_space<vmem>>, vector<1x8x256xf32>
    %196 = vector.shape_cast %195 : vector<1x8x256xf32> to vector<8x256xf32>
    %197 = vector.shape_cast %194 : vector<8x256xf32> to vector<1x8x256xf32>
    tpu.vector_store %arg9[%c1_150, %c0_151, %c0_152], %197 {strides = array<i32>} : memref<2x8x256xf32, #tpu.memory_space<vmem>>, vector<1x8x256xf32>,
    return
  }
  func.func @transform_0(%arg0: i32) -> (i32, i32, i32) {
    %c0_i32 = arith.constant 0 : i32
    %c0_i32_0 = arith.constant 0 : i32
    %c0_i32_1 = arith.constant 0 : i32
    return %arg0, %c0_i32, %c0_i32_0 : i32, i32, i32
  }
  func.func @transform_1(%arg0: i32) -> (i32, i32) {
    %c0_i32 = arith.constant 0 : i32
    %c0_i32_0 = arith.constant 0 : i32
    %c0_i32_1 = arith.constant 0 : i32
    return %c0_i32, %c0_i32_0 : i32, i32
  }
  func.func @transform_2(%arg0: i32) -> (i32, i32) {
    %c0_i32 = arith.constant 0 : i32
    %c0_i32_0 = arith.constant 0 : i32
    %c0_i32_1 = arith.constant 0 : i32
    return %c0_i32, %c0_i32_0 : i32, i32
  }
  func.func @transform_3(%arg0: i32) -> (i32, i32) {
    %c0_i32 = arith.constant 0 : i32
    %c0_i32_0 = arith.constant 0 : i32
    %c0_i32_1 = arith.constant 0 : i32
    return %c0_i32, %c0_i32_0 : i32, i32
  }
  func.func @transform_4(%arg0: i32) -> (i32, i32) {
    %c0_i32 = arith.constant 0 : i32
    %c0_i32_0 = arith.constant 0 : i32
    %c0_i32_1 = arith.constant 0 : i32
    return %c0_i32, %c0_i32_0 : i32, i32
  }
  func.func @transform_5(%arg0: i32) -> (i32, i32) {
    %c0_i32 = arith.constant 0 : i32
    %c0_i32_0 = arith.constant 0 : i32
    %c0_i32_1 = arith.constant 0 : i32
    return %c0_i32, %c0_i32_0 : i32, i32
  }
  func.func @transform_6(%arg0: i32) -> (i32, i32) {
    %c0_i32 = arith.constant 0 : i32
    %c0_i32_0 = arith.constant 0 : i32
    %c0_i32_1 = arith.constant 0 : i32
    return %c0_i32, %c0_i32_0 : i32, i32
  }
  func.func @transform_7(%arg0: i32) -> (i32, i32) {
    %c0_i32 = arith.constant 0 : i32
    %c0_i32_0 = arith.constant 0 : i32
    %c0_i32_1 = arith.constant 0 : i32
    return %c0_i32, %c0_i32_0 : i32, i32
  }
  func.func @transform_8(%arg0: i32) -> (i32, i32, i32) {
    %c0_i32 = arith.constant 0 : i32
    %c0_i32_0 = arith.constant 0 : i32
    %c0_i32_1 = arith.constant 0 : i32
    return %arg0, %c0_i32, %c0_i32_0 : i32, i32, i32
  }
}

</mosaic_0001>

<llo_original>
// kernel: tpu_custom_call.1
$region0: #{tpu_custom_call.1}
  #allocation0 [shape = 'u32[]', space=smem, size = 0x4, offset = 0x4, fixed_abs, tag = 'smem constant byte address 0x4 - core index']
  #allocation1 [shape = 'u32[72,128]{1,0:T(1,128)}', space=vmem, size = 0x9000, scoped, tag = 'internal scratch']
  #allocation2 [shape = 'f32[24,512]{1,0:T(8,128)}', space=vmem, size = 0xc000, scoped, tag = 'scratch operand']
  %s0 = inlined_call_operand.hbm [shape: f32[2,8,256], index: 0, kind: input, shape index: {}]
  %s1 = inlined_call_operand.vmem [shape: f32[8,72], index: 1, kind: input, shape index: {}]
  %s2 = inlined_call_operand.vmem [shape: f32[8,72], index: 2, kind: input, shape index: {}]
  %s3 = inlined_call_operand.vmem [shape: f32[8,1], index: 3, kind: input, shape index: {}]
  %s4 = inlined_call_operand.vmem [shape: f32[8,1], index: 4, kind: input, shape index: {}]
  %s5 = inlined_call_operand.vmem [shape: f32[8,1], index: 5, kind: input, shape index: {}]
  %s6 = inlined_call_operand.vmem [shape: f32[8,1], index: 6, kind: input, shape index: {}]
  %s7 = inlined_call_operand.vmem [shape: f32[2,256], index: 7, kind: input, shape index: {}]
  %s8 = inlined_call_operand.hbm [shape: f32[2,8,256], index: 8, kind: output, shape index: {}]
  %s9 = sld [smem:[#allocation0]]
  $region46: #{tpu_custom_call.1} parent=0
    _
  %s11 = ssub.s32 1, %s9
  %s12 = scalar_select 0, %s11, %s9
  $region1: #{tpu_custom_call.1} parent=0
    #allocation3 [shape = 'u8[16384]{0}', space=vmem, size = 0x4000, scoped, tag = 'input window, operand 0, single buffered']
    #allocation4 [shape = 's32[1]{0}', space=sflag, size = 0x4, scoped, tag = 'scoped memory for tpu_custom_call.1']
    #allocation5 [shape = 's32[1]{0}', space=sflag, size = 0x4, scoped, tag = 'scoped memory for tpu_custom_call.1']
    #allocation6 [shape = 'u8[16384]{0}', space=vmem, size = 0x4000, scoped, tag = 'output window, operand 0, single buffered']
    %13 = vsyncpa [#allocation4], 0
    %14 = vsyncpa [#allocation5], 0
    // Predicated region
    $region2: #{tpu_custom_call.1} parent=1 // pred_check
      _
    $region3: #{tpu_custom_call.1} parent=1 // pred_check_branch
      %16 = sbr.rel (0) target = $region5
    $region4: #{tpu_custom_call.1} parent=1 // pred_region
      %18 = vsyncadd [#allocation4], 0
      %s19 = sshll.u32 %s0, 4
      %s20 = int_to_ptr.hbm [resolvable:$true] %s19
      %s21 = sshll.u32 [#allocation3], 4
      %s22 = int_to_ptr.vmem [resolvable:$true] %s21
      %27 = dma.hbm_to_vmem [thread:$0]  %s20, 512, %s22, [#allocation4], 256, 256, 16
    $region5: #{tpu_custom_call.1} parent=1 // pred_fallthru
      _
    // Predicated region
    $region6: #{tpu_custom_call.1} parent=1 // pred_check
      _
    $region7: #{tpu_custom_call.1} parent=1 // pred_check_branch
      %29 = sbr.rel (0) target = $region9
    $region8: #{tpu_custom_call.1} parent=1 // pred_region
      _
    $region9: #{tpu_custom_call.1} parent=1 // pred_fallthru
      _
    // Predicated region
    $region10: #{tpu_custom_call.1} parent=1 // pred_check
      _
    $region11: #{tpu_custom_call.1} parent=1 // pred_check_branch
      %31 = sbr.rel (0) target = $region13
    $region12: #{tpu_custom_call.1} parent=1 // pred_region
      _
    $region13: #{tpu_custom_call.1} parent=1 // pred_fallthru
      _
    // Predicated region
    $region14: #{tpu_custom_call.1} parent=1 // pred_check
      _
    $region15: #{tpu_custom_call.1} parent=1 // pred_check_branch
      %33 = sbr.rel (0) target = $region17
    $region16: #{tpu_custom_call.1} parent=1 // pred_region
      _
    $region17: #{tpu_custom_call.1} parent=1 // pred_fallthru
      _
    // Predicated region
    $region18: #{tpu_custom_call.1} parent=1 // pred_check
      _
    $region19: #{tpu_custom_call.1} parent=1 // pred_check_branch
      %35 = sbr.rel (0) target = $region21
    $region20: #{tpu_custom_call.1} parent=1 // pred_region
      _
    $region21: #{tpu_custom_call.1} parent=1 // pred_fallthru
      _
    // Predicated region
    $region22: #{tpu_custom_call.1} parent=1 // pred_check
      _
    $region23: #{tpu_custom_call.1} parent=1 // pred_check_branch
      %37 = sbr.rel (0) target = $region25
    $region24: #{tpu_custom_call.1} parent=1 // pred_region
      _
    $region25: #{tpu_custom_call.1} parent=1 // pred_fallthru
      _
    // Predicated region
    $region26: #{tpu_custom_call.1} parent=1 // pred_check
      _
    $region27: #{tpu_custom_call.1} parent=1 // pred_check_branch
      %39 = sbr.rel (0) target = $region29
    $region28: #{tpu_custom_call.1} parent=1 // pred_region
      _
    $region29: #{tpu_custom_call.1} parent=1 // pred_fallthru
      _
    // Predicated region
    $region30: #{tpu_custom_call.1} parent=1 // pred_check
      _
    $region31: #{tpu_custom_call.1} parent=1 // pred_check_branch
      %41 = sbr.rel (0) target = $region33
    $region32: #{tpu_custom_call.1} parent=1 // pred_region
      _
    $region33: #{tpu_custom_call.1} parent=1 // pred_fallthru
      _
    // Predicated region
    $region34: #{tpu_custom_call.1} parent=1 // pred_check
      _
    $region35: #{tpu_custom_call.1} parent=1 // pred_check_branch
      %43 = sbr.rel (0) target = $region37
    $region36: #{tpu_custom_call.1} parent=1 // pred_region
      %45 = dma.done [#allocation4], 512
    $region37: #{tpu_custom_call.1} parent=1 // pred_fallthru
      _
    %46 = vst [vmem:[#allocation2] sm:$0xff] 0.0
    %47 = vst [vmem:[#allocation2 + $0x20] sm:$0xff] 0.0
    %48 = vst [vmem:[#allocation2 + $0x40] sm:$0xff] 0.0
    %49 = vst [vmem:[#allocation2 + $0x18] sm:$0xff] 0.0
    %50 = vst [vmem:[#allocation2 + $0x38] sm:$0xff] 0.0
    %51 = vst [vmem:[#allocation2 + $0x58] sm:$0xff] 0.0
    %v52 = vld [vmem:[%s7] ss:$2 sm:$0x3]
    %s53 = scalar_lea.vmem %s7, 1
    %v54 = vld [vmem:[%s53] ss:$2 sm:$0x3]
    %v55 = vld [vmem:[#allocation3] sm:$0xff]
    %v56 = vld [vmem:[#allocation3 + $0x8] sm:$0xff]
    %57 = vst [vmem:[#allocation2 + $0x28] sm:$0xff] %v55
    %58 = vst [vmem:[#allocation2 + $0x30] sm:$0xff] %v56
    %v59 = vld [vmem:[#allocation2 + $0x20] sm:$0xff]
    %v60 = vld [vmem:[#allocation2 + $0x28] sm:$0xff]
    %v61 = vld [vmem:[#allocation2 + $0x30] sm:$0xff]
    %v63 = vperm.slane %v52, 0
    %v64 = vperm.slane %v52, 1
    %65 = vrot.lane.b32.xlu0 %v63, 127
    %v66 = vpop.permute.xlu0 %65
    %67 = vrot.lane.b32.xlu0 %v64, 127
    %v68 = vpop.permute.xlu0 %67
    %vm69 = vcmask 1039360
    %v70 = vsel %vm69, %v66, %v68
    %v74 = vmul.f32 %v59, %v66
    %v75 = vmul.f32 %v60, %v70
    %v76 = vmul.f32 %v61, %v68
    %80 = vrot.lane.b32.xlu0 %v74, 1
    %v81 = vpop.permute.xlu0 %80
    %82 = vrot.lane.b32.xlu0 %v75, 1
    %v83 = vpop.permute.xlu0 %82
    %84 = vrot.lane.b32.xlu0 %v76, 1
    %v85 = vpop.permute.xlu0 %84
    %vm86 = vcmask 7168
    %v87 = vsel %vm86, %v81, %v83
    %v88 = vsel %vm86, %v83, %v85
    %91 = vst [vmem:[#allocation2 + $0x8] sm:$0xff] %v87
    %92 = vst [vmem:[#allocation2 + $0x10] sm:$0xff] %v88
    %v93 = vld [vmem:[#allocation2 + $0x28] sm:$0xff]
    %v94 = vld [vmem:[#allocation2 + $0x30] sm:$0xff]
    %v95 = vld [vmem:[#allocation2 + $0x38] sm:$0xff]
    %v97 = vperm.slane %v54, 0
    %v98 = vperm.slane %v54, 1
    %99 = vrot.lane.b32.xlu0 %v97, 1
    %v100 = vpop.permute.xlu0 %99
    %101 = vrot.lane.b32.xlu0 %v98, 1
    %v102 = vpop.permute.xlu0 %101
    %v103 = vsel %vm86, %v100, %v102
    %v107 = vmul.f32 %v93, %v100
    %v108 = vmul.f32 %v94, %v103
    %v109 = vmul.f32 %v95, %v102
    %113 = vrot.lane.b32.xlu0 %v107, 127
    %v114 = vpop.permute.xlu0 %113
    %115 = vrot.lane.b32.xlu0 %v108, 127
    %v116 = vpop.permute.xlu0 %115
    %117 = vrot.lane.b32.xlu0 %v109, 127
    %v118 = vpop.permute.xlu0 %117
    %v119 = vsel %vm69, %v114, %v116
    %v120 = vsel %vm69, %v116, %v118
    %123 = vst [vmem:[#allocation2 + $0x48] sm:$0xff] %v119
    %124 = vst [vmem:[#allocation2 + $0x50] sm:$0xff] %v120
    %v125 = vld [vmem:[#allocation2] sm:$0xff]
    %v126 = vld [vmem:[#allocation2 + $0x8] sm:$0xff]
    %v127 = vld [vmem:[#allocation2 + $0x10] sm:$0xff]
    %v128 = vld [vmem:[#allocation2 + $0x20] sm:$0xff]
    %v129 = vld [vmem:[#allocation2 + $0x28] sm:$0xff]
    %v130 = vld [vmem:[#allocation2 + $0x30] sm:$0xff]
    %v131 = vld [vmem:[#allocation2 + $0x40] sm:$0xff]
    %v132 = vld [vmem:[#allocation2 + $0x48] sm:$0xff]
    %v133 = vld [vmem:[#allocation2 + $0x50] sm:$0xff]
    %v134 = vld [vmem:[%s1] sm:$0xff]
    %136 = vrot.lane.b32.xlu0 %v134, 104
    %v137 = vpop.permute.xlu0 %136
    %vm138 = vcmask 195584
    %v139 = vsel %vm138, %v137, 0
    %141 = vmatpush.msra.mxu0 0.0
    %142 = vmatpush.msra.mxu0 0.0
    %143 = vmatpush.msra.mxu0 0.0
    %144 = vmatpush.msra.mxu0 0.0
    %145 = vmatpush.msra.mxu0 0.0
    %146 = vmatpush.msra.mxu0 0.0
    %147 = vmatpush.msra.mxu0 0.0
    %148 = vmatpush.msra.mxu0 0.0
    %149 = vmatpush.msra.mxu0 0.0
    %150 = vmatpush.msra.mxu0 0.0
    %151 = vmatpush.msra.mxu0 0.0
    %152 = vmatpush.msra.mxu0 0.0
    %153 = vmatpush.msra.mxu0 0.0
    %154 = vmatpush.msra.mxu0 %v132
    %155 = vmatpush.msra.mxu0 %v129
    %156 = vmatpush.msra.mxu0 %v126
    %157 = vmatmul.f32.gmra.mxu0 %v139
    %v158 = vpop.f32.mrf.mxu0
    %v159 = vadd.f32 0.0, %v158
    %160 = vdwg.mxu0
    %161 = vmatpush.msra.mxu0 0.0
    %162 = vmatpush.msra.mxu0 0.0
    %163 = vmatpush.msra.mxu0 0.0
    %164 = vmatpush.msra.mxu0 0.0
    %165 = vmatpush.msra.mxu0 0.0
    %166 = vmatpush.msra.mxu0 0.0
    %167 = vmatpush.msra.mxu0 0.0
    %168 = vmatpush.msra.mxu0 0.0
    %169 = vmatpush.msra.mxu0 0.0
    %170 = vmatpush.msra.mxu0 0.0
    %171 = vmatpush.msra.mxu0 0.0
    %172 = vmatpush.msra.mxu0 0.0
    %173 = vmatpush.msra.mxu0 0.0
    %174 = vmatpush.msra.mxu0 %v133
    %175 = vmatpush.msra.mxu0 %v130
    %176 = vmatpush.msra.mxu0 %v127
    %177 = vmatmul.f32.gmra.mxu0 %v139
    %v178 = vpop.f32.mrf.mxu0
    %v179 = vadd.f32 0.0, %v178
    %180 = vdwg.mxu0
    %190 = vrot.lane.b32.xlu0 %v125, 16
    %v191 = vpop.permute.xlu0 %190
    %192 = vrot.lane.b32.xlu0 %v126, 16
    %v193 = vpop.permute.xlu0 %192
    %194 = vrot.lane.b32.xlu0 %v127, 16
    %v195 = vpop.permute.xlu0 %194
    %196 = vrot.lane.b32.xlu0 %v128, 16
    %v197 = vpop.permute.xlu0 %196
    %198 = vrot.lane.b32.xlu0 %v129, 16
    %v199 = vpop.permute.xlu0 %198
    %200 = vrot.lane.b32.xlu0 %v130, 16
    %v201 = vpop.permute.xlu0 %200
    %202 = vrot.lane.b32.xlu0 %v131, 16
    %v203 = vpop.permute.xlu0 %202
    %204 = vrot.lane.b32.xlu0 %v132, 16
    %v205 = vpop.permute.xlu0 %204
    %206 = vrot.lane.b32.xlu0 %v133, 16
    %v207 = vpop.permute.xlu0 %206
    %vm208 = vcmask 130048
    %v209 = vsel %vm208, %v191, %v193
    %v210 = vsel %vm208, %v193, %v195
    %v211 = vsel %vm208, %v197, %v199
    %v212 = vsel %vm208, %v199, %v201
    %v213 = vsel %vm208, %v203, %v205
    %v214 = vsel %vm208, %v205, %v207
    %v221 = vsel %vm138, %v134, 0
    %223 = vmatpush.msra.mxu0 0.0
    %224 = vmatpush.msra.mxu0 0.0
    %225 = vmatpush.msra.mxu0 0.0
    %226 = vmatpush.msra.mxu0 0.0
    %227 = vmatpush.msra.mxu0 0.0
    %228 = vmatpush.msra.mxu0 0.0
    %229 = vmatpush.msra.mxu0 0.0
    %230 = vmatpush.msra.mxu0 0.0
    %231 = vmatpush.msra.mxu0 0.0
    %232 = vmatpush.msra.mxu0 0.0
    %233 = vmatpush.msra.mxu0 0.0
    %234 = vmatpush.msra.mxu0 0.0
    %235 = vmatpush.msra.mxu0 0.0
    %236 = vmatpush.msra.mxu0 %v213
    %237 = vmatpush.msra.mxu0 %v211
    %238 = vmatpush.msra.mxu0 %v209
    %239 = vmatmul.f32.gmra.mxu0 %v221
    %v240 = vpop.f32.mrf.mxu0
    %v241 = vadd.f32 %v159, %v240
    %242 = vdwg.mxu0
    %243 = vmatpush.msra.mxu0 0.0
    %244 = vmatpush.msra.mxu0 0.0
    %245 = vmatpush.msra.mxu0 0.0
    %246 = vmatpush.msra.mxu0 0.0
    %247 = vmatpush.msra.mxu0 0.0
    %248 = vmatpush.msra.mxu0 0.0
    %249 = vmatpush.msra.mxu0 0.0
    %250 = vmatpush.msra.mxu0 0.0
    %251 = vmatpush.msra.mxu0 0.0
    %252 = vmatpush.msra.mxu0 0.0
    %253 = vmatpush.msra.mxu0 0.0
    %254 = vmatpush.msra.mxu0 0.0
    %255 = vmatpush.msra.mxu0 0.0
    %256 = vmatpush.msra.mxu0 %v214
    %257 = vmatpush.msra.mxu0 %v212
    %258 = vmatpush.msra.mxu0 %v210
    %259 = vmatmul.f32.gmra.mxu0 %v221
    %v260 = vpop.f32.mrf.mxu0
    %v261 = vadd.f32 %v179, %v260
    %262 = vdwg.mxu0
    %v263 = vld [vmem:[#allocation2 + $0x8] sm:$0xff]
    %v264 = vld [vmem:[#allocation2 + $0x10] sm:$0xff]
    %v265 = vld [vmem:[#allocation2 + $0x18] sm:$0xff]
    %v266 = vld [vmem:[#allocation2 + $0x28] sm:$0xff]
    %v267 = vld [vmem:[#allocation2 + $0x30] sm:$0xff]
    %v268 = vld [vmem:[#allocation2 + $0x38] sm:$0xff]
    %v269 = vld [vmem:[#allocation2 + $0x48] sm:$0xff]
    %v270 = vld [vmem:[#allocation2 + $0x50] sm:$0xff]
    %v271 = vld [vmem:[#allocation2 + $0x58] sm:$0xff]
    %272 = vrot.lane.b32.xlu0 %v134, 80
    %v273 = vpop.permute.xlu0 %272
    %283 = vrot.lane.b32.xlu0 %v263, 112
    %v284 = vpop.permute.xlu0 %283
    %285 = vrot.lane.b32.xlu0 %v264, 112
    %v286 = vpop.permute.xlu0 %285
    %287 = vrot.lane.b32.xlu0 %v265, 112
    %v288 = vpop.permute.xlu0 %287
    %289 = vrot.lane.b32.xlu0 %v266, 112
    %v290 = vpop.permute.xlu0 %289
    %291 = vrot.lane.b32.xlu0 %v267, 112
    %v292 = vpop.permute.xlu0 %291
    %293 = vrot.lane.b32.xlu0 %v268, 112
    %v294 = vpop.permute.xlu0 %293
    %295 = vrot.lane.b32.xlu0 %v269, 112
    %v296 = vpop.permute.xlu0 %295
    %297 = vrot.lane.b32.xlu0 %v270, 112
    %v298 = vpop.permute.xlu0 %297
    %299 = vrot.lane.b32.xlu0 %v271, 112
    %v300 = vpop.permute.xlu0 %299
    %vm301 = vcmask 916480
    %v302 = vsel %vm301, %v284, %v286
    %v303 = vsel %vm301, %v286, %v288
    %v304 = vsel %vm301, %v290, %v292
    %v305 = vsel %vm301, %v292, %v294
    %v306 = vsel %vm301, %v296, %v298
    %v307 = vsel %vm301, %v298, %v300
    %v314 = vsel %vm138, %v273, 0
    %316 = vmatpush.msra.mxu0 0.0
    %317 = vmatpush.msra.mxu0 0.0
    %318 = vmatpush.msra.mxu0 0.0
    %319 = vmatpush.msra.mxu0 0.0
    %320 = vmatpush.msra.mxu0 0.0
    %321 = vmatpush.msra.mxu0 0.0
    %322 = vmatpush.msra.mxu0 0.0
    %323 = vmatpush.msra.mxu0 0.0
    %324 = vmatpush.msra.mxu0 0.0
    %325 = vmatpush.msra.mxu0 0.0
    %326 = vmatpush.msra.mxu0 0.0
    %327 = vmatpush.msra.mxu0 0.0
    %328 = vmatpush.msra.mxu0 0.0
    %329 = vmatpush.msra.mxu0 %v306
    %330 = vmatpush.msra.mxu0 %v304
    %331 = vmatpush.msra.mxu0 %v302
    %332 = vmatmul.f32.gmra.mxu0 %v314
    %v333 = vpop.f32.mrf.mxu0
    %v334 = vadd.f32 0.0, %v333
    %335 = vdwg.mxu0
    %336 = vmatpush.msra.mxu0 0.0
    %337 = vmatpush.msra.mxu0 0.0
    %338 = vmatpush.msra.mxu0 0.0
    %339 = vmatpush.msra.mxu0 0.0
    %340 = vmatpush.msra.mxu0 0.0
    %341 = vmatpush.msra.mxu0 0.0
    %342 = vmatpush.msra.mxu0 0.0
    %343 = vmatpush.msra.mxu0 0.0
    %344 = vmatpush.msra.mxu0 0.0
    %345 = vmatpush.msra.mxu0 0.0
    %346 = vmatpush.msra.mxu0 0.0
    %347 = vmatpush.msra.mxu0 0.0
    %348 = vmatpush.msra.mxu0 0.0
    %349 = vmatpush.msra.mxu0 %v307
    %350 = vmatpush.msra.mxu0 %v305
    %351 = vmatpush.msra.mxu0 %v303
    %352 = vmatmul.f32.gmra.mxu0 %v314
    %v353 = vpop.f32.mrf.mxu0
    %v354 = vadd.f32 0.0, %v353
    %355 = vdwg.mxu0
    %v356 = vadd.f32 %v241, %v334
    %v357 = vadd.f32 %v261, %v354
    %v358 = vadd.f32 %v356, %v357
    %359 = vadd.xlane.f32.xlu0 %v358
    %v360 = vpop.xlane.xlu0 %359
    %v361 = vmul.f32 %v360, 0.00390625
    %v362 = vmul.f32 %v356, %v356
    %v363 = vmul.f32 %v357, %v357
    %v364 = vadd.f32 %v362, %v363
    %365 = vadd.xlane.f32.xlu0 %v364
    %v366 = vpop.xlane.xlu0 %365
    %v367 = vmul.f32 %v366, 0.00390625
    %v368 = vmul.f32 %v361, %v361
    %v369 = vsub.f32 %v367, %v368
    %v370 = vld [vmem:[%s3] sm:$0xff]
    %v371 = vadd.f32 %v369, 1e-05
    %v372 = vrsqrt.pop %v371
    %v373 = vmul.f32 %v372, %v371
    %v374 = vmul.f32 %v373, %v372
    %v375 = vmul.f32 0.5, %v374
    %v376 = vsub.f32 1.5, %v375
    %v377 = vmul.f32 %v372, %v376
    %vm378 = vweird.f32 %v371
    %vm379 = vweird.f32 %v372
    %vm380 = vmor %vm378, %vm379
    %v381 = vsel %vm380, %v372, %v377
    %v382 = vmul.f32 %v370, %v381
    %v383 = vld [vmem:[%s4] sm:$0xff]
    %v384 = vmul.f32 %v361, %v382
    %v385 = vsub.f32 %v383, %v384
    %387 = vset.pattern.permute.xlu0 0
    %388 = vperm.xlu0 %387, %v382
    %v389 = vpop.permute.xlu0 %388
    %v391 = vmul.f32 %v356, %v389
    %v392 = vmul.f32 %v357, %v389
    %394 = vset.pattern.permute.xlu0 0
    %395 = vperm.xlu0 %394, %v385
    %v396 = vpop.permute.xlu0 %395
    %v398 = vadd.f32 %v391, %v396
    %v399 = vadd.f32 %v392, %v396
    %v400 = vmax.f32 %v398, 0.0
    %v401 = vmax.f32 %v399, 0.0
    %402 = vst [vmem:[#allocation2 + $0x28] sm:$0xff] %v400
    %403 = vst [vmem:[#allocation2 + $0x30] sm:$0xff] %v401
    %v404 = vld [vmem:[#allocation2 + $0x20] sm:$0xff]
    %v405 = vld [vmem:[#allocation2 + $0x28] sm:$0xff]
    %v406 = vld [vmem:[#allocation2 + $0x30] sm:$0xff]
    %v407 = vmul.f32 %v404, %v66
    %v408 = vmul.f32 %v405, %v70
    %v409 = vmul.f32 %v406, %v68
    %413 = vrot.lane.b32.xlu0 %v407, 1
    %v414 = vpop.permute.xlu0 %413
    %415 = vrot.lane.b32.xlu0 %v408, 1
    %v416 = vpop.permute.xlu0 %415
    %417 = vrot.lane.b32.xlu0 %v409, 1
    %v418 = vpop.permute.xlu0 %417
    %v419 = vsel %vm86, %v414, %v416
    %v420 = vsel %vm86, %v416, %v418
    %423 = vst [vmem:[#allocation2 + $0x8] sm:$0xff] %v419
    %424 = vst [vmem:[#allocation2 + $0x10] sm:$0xff] %v420
    %v425 = vld [vmem:[#allocation2 + $0x28] sm:$0xff]
    %v426 = vld [vmem:[#allocation2 + $0x30] sm:$0xff]
    %v427 = vld [vmem:[#allocation2 + $0x38] sm:$0xff]
    %v428 = vmul.f32 %v425, %v100
    %v429 = vmul.f32 %v426, %v103
    %v430 = vmul.f32 %v427, %v102
    %434 = vrot.lane.b32.xlu0 %v428, 127
    %v435 = vpop.permute.xlu0 %434
    %436 = vrot.lane.b32.xlu0 %v429, 127
    %v437 = vpop.permute.xlu0 %436
    %438 = vrot.lane.b32.xlu0 %v430, 127
    %v439 = vpop.permute.xlu0 %438
    %v440 = vsel %vm69, %v435, %v437
    %v441 = vsel %vm69, %v437, %v439
    %444 = vst [vmem:[#allocation2 + $0x48] sm:$0xff] %v440
    %445 = vst [vmem:[#allocation2 + $0x50] sm:$0xff] %v441
    %v446 = vld [vmem:[#allocation2] sm:$0xff]
    %v447 = vld [vmem:[#allocation2 + $0x8] sm:$0xff]
    %v448 = vld [vmem:[#allocation2 + $0x10] sm:$0xff]
    %v449 = vld [vmem:[#allocation2 + $0x20] sm:$0xff]
    %v450 = vld [vmem:[#allocation2 + $0x28] sm:$0xff]
    %v451 = vld [vmem:[#allocation2 + $0x30] sm:$0xff]
    %v452 = vld [vmem:[#allocation2 + $0x40] sm:$0xff]
    %v453 = vld [vmem:[#allocation2 + $0x48] sm:$0xff]
    %v454 = vld [vmem:[#allocation2 + $0x50] sm:$0xff]
    %v455 = vld [vmem:[%s2] sm:$0xff]
    %457 = vrot.lane.b32.xlu0 %v455, 104
    %v458 = vpop.permute.xlu0 %457
    %v459 = vsel %vm138, %v458, 0
    %461 = vmatpush.msra.mxu0 0.0
    %462 = vmatpush.msra.mxu0 0.0
    %463 = vmatpush.msra.mxu0 0.0
    %464 = vmatpush.msra.mxu0 0.0
    %465 = vmatpush.msra.mxu0 0.0
    %466 = vmatpush.msra.mxu0 0.0
    %467 = vmatpush.msra.mxu0 0.0
    %468 = vmatpush.msra.mxu0 0.0
    %469 = vmatpush.msra.mxu0 0.0
    %470 = vmatpush.msra.mxu0 0.0
    %471 = vmatpush.msra.mxu0 0.0
    %472 = vmatpush.msra.mxu0 0.0
    %473 = vmatpush.msra.mxu0 0.0
    %474 = vmatpush.msra.mxu0 %v453
    %475 = vmatpush.msra.mxu0 %v450
    %476 = vmatpush.msra.mxu0 %v447
    %477 = vmatmul.f32.gmra.mxu0 %v459
    %v478 = vpop.f32.mrf.mxu0
    %v479 = vadd.f32 0.0, %v478
    %480 = vdwg.mxu0
    %481 = vmatpush.msra.mxu0 0.0
    %482 = vmatpush.msra.mxu0 0.0
    %483 = vmatpush.msra.mxu0 0.0
    %484 = vmatpush.msra.mxu0 0.0
    %485 = vmatpush.msra.mxu0 0.0
    %486 = vmatpush.msra.mxu0 0.0
    %487 = vmatpush.msra.mxu0 0.0
    %488 = vmatpush.msra.mxu0 0.0
    %489 = vmatpush.msra.mxu0 0.0
    %490 = vmatpush.msra.mxu0 0.0
    %491 = vmatpush.msra.mxu0 0.0
    %492 = vmatpush.msra.mxu0 0.0
    %493 = vmatpush.msra.mxu0 0.0
    %494 = vmatpush.msra.mxu0 %v454
    %495 = vmatpush.msra.mxu0 %v451
    %496 = vmatpush.msra.mxu0 %v448
    %497 = vmatmul.f32.gmra.mxu0 %v459
    %v498 = vpop.f32.mrf.mxu0
    %v499 = vadd.f32 0.0, %v498
    %500 = vdwg.mxu0
    %510 = vrot.lane.b32.xlu0 %v446, 16
    %v511 = vpop.permute.xlu0 %510
    %512 = vrot.lane.b32.xlu0 %v447, 16
    %v513 = vpop.permute.xlu0 %512
    %514 = vrot.lane.b32.xlu0 %v448, 16
    %v515 = vpop.permute.xlu0 %514
    %516 = vrot.lane.b32.xlu0 %v449, 16
    %v517 = vpop.permute.xlu0 %516
    %518 = vrot.lane.b32.xlu0 %v450, 16
    %v519 = vpop.permute.xlu0 %518
    %520 = vrot.lane.b32.xlu0 %v451, 16
    %v521 = vpop.permute.xlu0 %520
    %522 = vrot.lane.b32.xlu0 %v452, 16
    %v523 = vpop.permute.xlu0 %522
    %524 = vrot.lane.b32.xlu0 %v453, 16
    %v525 = vpop.permute.xlu0 %524
    %526 = vrot.lane.b32.xlu0 %v454, 16
    %v527 = vpop.permute.xlu0 %526
    %v528 = vsel %vm208, %v511, %v513
    %v529 = vsel %vm208, %v513, %v515
    %v530 = vsel %vm208, %v517, %v519
    %v531 = vsel %vm208, %v519, %v521
    %v532 = vsel %vm208, %v523, %v525
    %v533 = vsel %vm208, %v525, %v527
    %v540 = vsel %vm138, %v455, 0
    %542 = vmatpush.msra.mxu0 0.0
    %543 = vmatpush.msra.mxu0 0.0
    %544 = vmatpush.msra.mxu0 0.0
    %545 = vmatpush.msra.mxu0 0.0
    %546 = vmatpush.msra.mxu0 0.0
    %547 = vmatpush.msra.mxu0 0.0
    %548 = vmatpush.msra.mxu0 0.0
    %549 = vmatpush.msra.mxu0 0.0
    %550 = vmatpush.msra.mxu0 0.0
    %551 = vmatpush.msra.mxu0 0.0
    %552 = vmatpush.msra.mxu0 0.0
    %553 = vmatpush.msra.mxu0 0.0
    %554 = vmatpush.msra.mxu0 0.0
    %555 = vmatpush.msra.mxu0 %v532
    %556 = vmatpush.msra.mxu0 %v530
    %557 = vmatpush.msra.mxu0 %v528
    %558 = vmatmul.f32.gmra.mxu0 %v540
    %v559 = vpop.f32.mrf.mxu0
    %v560 = vadd.f32 %v479, %v559
    %561 = vdwg.mxu0
    %562 = vmatpush.msra.mxu0 0.0
    %563 = vmatpush.msra.mxu0 0.0
    %564 = vmatpush.msra.mxu0 0.0
    %565 = vmatpush.msra.mxu0 0.0
    %566 = vmatpush.msra.mxu0 0.0
    %567 = vmatpush.msra.mxu0 0.0
    %568 = vmatpush.msra.mxu0 0.0
    %569 = vmatpush.msra.mxu0 0.0
    %570 = vmatpush.msra.mxu0 0.0
    %571 = vmatpush.msra.mxu0 0.0
    %572 = vmatpush.msra.mxu0 0.0
    %573 = vmatpush.msra.mxu0 0.0
    %574 = vmatpush.msra.mxu0 0.0
    %575 = vmatpush.msra.mxu0 %v533
    %576 = vmatpush.msra.mxu0 %v531
    %577 = vmatpush.msra.mxu0 %v529
    %578 = vmatmul.f32.gmra.mxu0 %v540
    %v579 = vpop.f32.mrf.mxu0
    %v580 = vadd.f32 %v499, %v579
    %581 = vdwg.mxu0
    %v582 = vld [vmem:[#allocation2 + $0x8] sm:$0xff]
    %v583 = vld [vmem:[#allocation2 + $0x10] sm:$0xff]
    %v584 = vld [vmem:[#allocation2 + $0x18] sm:$0xff]
    %v585 = vld [vmem:[#allocation2 + $0x28] sm:$0xff]
    %v586 = vld [vmem:[#allocation2 + $0x30] sm:$0xff]
    %v587 = vld [vmem:[#allocation2 + $0x38] sm:$0xff]
    %v588 = vld [vmem:[#allocation2 + $0x48] sm:$0xff]
    %v589 = vld [vmem:[#allocation2 + $0x50] sm:$0xff]
    %v590 = vld [vmem:[#allocation2 + $0x58] sm:$0xff]
    %591 = vrot.lane.b32.xlu0 %v455, 80
    %v592 = vpop.permute.xlu0 %591
    %602 = vrot.lane.b32.xlu0 %v582, 112
    %v603 = vpop.permute.xlu0 %602
    %604 = vrot.lane.b32.xlu0 %v583, 112
    %v605 = vpop.permute.xlu0 %604
    %606 = vrot.lane.b32.xlu0 %v584, 112
    %v607 = vpop.permute.xlu0 %606
    %608 = vrot.lane.b32.xlu0 %v585, 112
    %v609 = vpop.permute.xlu0 %608
    %610 = vrot.lane.b32.xlu0 %v586, 112
    %v611 = vpop.permute.xlu0 %610
    %612 = vrot.lane.b32.xlu0 %v587, 112
    %v613 = vpop.permute.xlu0 %612
    %614 = vrot.lane.b32.xlu0 %v588, 112
    %v615 = vpop.permute.xlu0 %614
    %616 = vrot.lane.b32.xlu0 %v589, 112
    %v617 = vpop.permute.xlu0 %616
    %618 = vrot.lane.b32.xlu0 %v590, 112
    %v619 = vpop.permute.xlu0 %618
    %v620 = vsel %vm301, %v603, %v605
    %v621 = vsel %vm301, %v605, %v607
    %v622 = vsel %vm301, %v609, %v611
    %v623 = vsel %vm301, %v611, %v613
    %v624 = vsel %vm301, %v615, %v617
    %v625 = vsel %vm301, %v617, %v619
    %v632 = vsel %vm138, %v592, 0
    %634 = vmatpush.msra.mxu0 0.0
    %635 = vmatpush.msra.mxu0 0.0
    %636 = vmatpush.msra.mxu0 0.0
    %637 = vmatpush.msra.mxu0 0.0
    %638 = vmatpush.msra.mxu0 0.0
    %639 = vmatpush.msra.mxu0 0.0
    %640 = vmatpush.msra.mxu0 0.0
    %641 = vmatpush.msra.mxu0 0.0
    %642 = vmatpush.msra.mxu0 0.0
    %643 = vmatpush.msra.mxu0 0.0
    %644 = vmatpush.msra.mxu0 0.0
    %645 = vmatpush.msra.mxu0 0.0
    %646 = vmatpush.msra.mxu0 0.0
    %647 = vmatpush.msra.mxu0 %v624
    %648 = vmatpush.msra.mxu0 %v622
    %649 = vmatpush.msra.mxu0 %v620
    %650 = vmatmul.f32.gmra.mxu0 %v632
    %v651 = vpop.f32.mrf.mxu0
    %v652 = vadd.f32 0.0, %v651
    %653 = vdwg.mxu0
    %654 = vmatpush.msra.mxu0 0.0
    %655 = vmatpush.msra.mxu0 0.0
    %656 = vmatpush.msra.mxu0 0.0
    %657 = vmatpush.msra.mxu0 0.0
    %658 = vmatpush.msra.mxu0 0.0
    %659 = vmatpush.msra.mxu0 0.0
    %660 = vmatpush.msra.mxu0 0.0
    %661 = vmatpush.msra.mxu0 0.0
    %662 = vmatpush.msra.mxu0 0.0
    %663 = vmatpush.msra.mxu0 0.0
    %664 = vmatpush.msra.mxu0 0.0
    %665 = vmatpush.msra.mxu0 0.0
    %666 = vmatpush.msra.mxu0 0.0
    %667 = vmatpush.msra.mxu0 %v625
    %668 = vmatpush.msra.mxu0 %v623
    %669 = vmatpush.msra.mxu0 %v621
    %670 = vmatmul.f32.gmra.mxu0 %v632
    %v671 = vpop.f32.mrf.mxu0
    %v672 = vadd.f32 0.0, %v671
    %673 = vdwg.mxu0
    %v674 = vadd.f32 %v560, %v652
    %v675 = vadd.f32 %v580, %v672
    %v676 = vadd.f32 %v674, %v675
    %677 = vadd.xlane.f32.xlu0 %v676
    %v678 = vpop.xlane.xlu0 %677
    %v679 = vmul.f32 %v678, 0.00390625
    %v680 = vmul.f32 %v674, %v674
    %v681 = vmul.f32 %v675, %v675
    %v682 = vadd.f32 %v680, %v681
    %683 = vadd.xlane.f32.xlu0 %v682
    %v684 = vpop.xlane.xlu0 %683
    %v685 = vmul.f32 %v684, 0.00390625
    %v686 = vmul.f32 %v679, %v679
    %v687 = vsub.f32 %v685, %v686
    %v688 = vld [vmem:[%s5] sm:$0xff]
    %v689 = vadd.f32 %v687, 1e-05
    %v690 = vrsqrt.pop %v689
    %v691 = vmul.f32 %v690, %v689
    %v692 = vmul.f32 %v691, %v690
    %v693 = vmul.f32 0.5, %v692
    %v694 = vsub.f32 1.5, %v693
    %v695 = vmul.f32 %v690, %v694
    %vm696 = vweird.f32 %v689
    %vm697 = vweird.f32 %v690
    %vm698 = vmor %vm696, %vm697
    %v699 = vsel %vm698, %v690, %v695
    %v700 = vmul.f32 %v688, %v699
    %v701 = vld [vmem:[%s6] sm:$0xff]
    %v702 = vmul.f32 %v679, %v700
    %v703 = vsub.f32 %v701, %v702
    %705 = vset.pattern.permute.xlu0 0
    %706 = vperm.xlu0 %705, %v700
    %v707 = vpop.permute.xlu0 %706
    %v709 = vmul.f32 %v674, %v707
    %v710 = vmul.f32 %v675, %v707
    %712 = vset.pattern.permute.xlu0 0
    %713 = vperm.xlu0 %712, %v703
    %v714 = vpop.permute.xlu0 %713
    %v716 = vadd.f32 %v709, %v714
    %v717 = vadd.f32 %v710, %v714
    %v718 = vld [vmem:[#allocation3] sm:$0xff]
    %v719 = vld [vmem:[#allocation3 + $0x8] sm:$0xff]
    %v720 = vadd.f32 %v718, %v716
    %v721 = vadd.f32 %v719, %v717
    %722 = vst [vmem:[#allocation6] sm:$0xff] %v720
    %723 = vst [vmem:[#allocation6 + $0x8] sm:$0xff] %v721
    %s724 = scalar_lea.vmem [#allocation3], 16
    %v725 = vld [vmem:[%s724] sm:$0xff]
    %v726 = vld [vmem:[%s724 + $0x8] sm:$0xff]
    %727 = vst [vmem:[#allocation2 + $0x28] sm:$0xff] %v725
    %728 = vst [vmem:[#allocation2 + $0x30] sm:$0xff] %v726
    %v729 = vld [vmem:[#allocation2 + $0x20] sm:$0xff]
    %v730 = vld [vmem:[#allocation2 + $0x28] sm:$0xff]
    %v731 = vld [vmem:[#allocation2 + $0x30] sm:$0xff]
    %v732 = vmul.f32 %v729, %v66
    %v733 = vmul.f32 %v730, %v70
    %v734 = vmul.f32 %v731, %v68
    %738 = vrot.lane.b32.xlu0 %v732, 1
    %v739 = vpop.permute.xlu0 %738
    %740 = vrot.lane.b32.xlu0 %v733, 1
    %v741 = vpop.permute.xlu0 %740
    %742 = vrot.lane.b32.xlu0 %v734, 1
    %v743 = vpop.permute.xlu0 %742
    %v744 = vsel %vm86, %v739, %v741
    %v745 = vsel %vm86, %v741, %v743
    %748 = vst [vmem:[#allocation2 + $0x8] sm:$0xff] %v744
    %749 = vst [vmem:[#allocation2 + $0x10] sm:$0xff] %v745
    %v750 = vld [vmem:[#allocation2 + $0x28] sm:$0xff]
    %v751 = vld [vmem:[#allocation2 + $0x30] sm:$0xff]
    %v752 = vld [vmem:[#allocation2 + $0x38] sm:$0xff]
    %v753 = vmul.f32 %v750, %v100
    %v754 = vmul.f32 %v751, %v103
    %v755 = vmul.f32 %v752, %v102
    %759 = vrot.lane.b32.xlu0 %v753, 127
    %v760 = vpop.permute.xlu0 %759
    %761 = vrot.lane.b32.xlu0 %v754, 127
    %v762 = vpop.permute.xlu0 %761
    %763 = vrot.lane.b32.xlu0 %v755, 127
    %v764 = vpop.permute.xlu0 %763
    %v765 = vsel %vm69, %v760, %v762
    %v766 = vsel %vm69, %v762, %v764
    %769 = vst [vmem:[#allocation2 + $0x48] sm:$0xff] %v765
    %770 = vst [vmem:[#allocation2 + $0x50] sm:$0xff] %v766
    %v771 = vld [vmem:[#allocation2] sm:$0xff]
    %v772 = vld [vmem:[#allocation2 + $0x8] sm:$0xff]
    %v773 = vld [vmem:[#allocation2 + $0x10] sm:$0xff]
    %v774 = vld [vmem:[#allocation2 + $0x20] sm:$0xff]
    %v775 = vld [vmem:[#allocation2 + $0x28] sm:$0xff]
    %v776 = vld [vmem:[#allocation2 + $0x30] sm:$0xff]
    %v777 = vld [vmem:[#allocation2 + $0x40] sm:$0xff]
    %v778 = vld [vmem:[#allocation2 + $0x48] sm:$0xff]
    %v779 = vld [vmem:[#allocation2 + $0x50] sm:$0xff]
    %v780 = vld [vmem:[%s1] sm:$0xff]
    %782 = vrot.lane.b32.xlu0 %v780, 104
    %v783 = vpop.permute.xlu0 %782
    %v784 = vsel %vm138, %v783, 0
    %786 = vmatpush.msra.mxu0 0.0
    %787 = vmatpush.msra.mxu0 0.0
    %788 = vmatpush.msra.mxu0 0.0
    %789 = vmatpush.msra.mxu0 0.0
    %790 = vmatpush.msra.mxu0 0.0
    %791 = vmatpush.msra.mxu0 0.0
    %792 = vmatpush.msra.mxu0 0.0
    %793 = vmatpush.msra.mxu0 0.0
    %794 = vmatpush.msra.mxu0 0.0
    %795 = vmatpush.msra.mxu0 0.0
    %796 = vmatpush.msra.mxu0 0.0
    %797 = vmatpush.msra.mxu0 0.0
    %798 = vmatpush.msra.mxu0 0.0
    %799 = vmatpush.msra.mxu0 %v778
    %800 = vmatpush.msra.mxu0 %v775
    %801 = vmatpush.msra.mxu0 %v772
    %802 = vmatmul.f32.gmra.mxu0 %v784
    %v803 = vpop.f32.mrf.mxu0
    %v804 = vadd.f32 0.0, %v803
    %805 = vdwg.mxu0
    %806 = vmatpush.msra.mxu0 0.0
    %807 = vmatpush.msra.mxu0 0.0
    %808 = vmatpush.msra.mxu0 0.0
    %809 = vmatpush.msra.mxu0 0.0
    %810 = vmatpush.msra.mxu0 0.0
    %811 = vmatpush.msra.mxu0 0.0
    %812 = vmatpush.msra.mxu0 0.0
    %813 = vmatpush.msra.mxu0 0.0
    %814 = vmatpush.msra.mxu0 0.0
    %815 = vmatpush.msra.mxu0 0.0
    %816 = vmatpush.msra.mxu0 0.0
    %817 = vmatpush.msra.mxu0 0.0
    %818 = vmatpush.msra.mxu0 0.0
    %819 = vmatpush.msra.mxu0 %v779
    %820 = vmatpush.msra.mxu0 %v776
    %821 = vmatpush.msra.mxu0 %v773
    %822 = vmatmul.f32.gmra.mxu0 %v784
    %v823 = vpop.f32.mrf.mxu0
    %v824 = vadd.f32 0.0, %v823
    %825 = vdwg.mxu0
    %835 = vrot.lane.b32.xlu0 %v771, 16
    %v836 = vpop.permute.xlu0 %835
    %837 = vrot.lane.b32.xlu0 %v772, 16
    %v838 = vpop.permute.xlu0 %837
    %839 = vrot.lane.b32.xlu0 %v773, 16
    %v840 = vpop.permute.xlu0 %839
    %841 = vrot.lane.b32.xlu0 %v774, 16
    %v842 = vpop.permute.xlu0 %841
    %843 = vrot.lane.b32.xlu0 %v775, 16
    %v844 = vpop.permute.xlu0 %843
    %845 = vrot.lane.b32.xlu0 %v776, 16
    %v846 = vpop.permute.xlu0 %845
    %847 = vrot.lane.b32.xlu0 %v777, 16
    %v848 = vpop.permute.xlu0 %847
    %849 = vrot.lane.b32.xlu0 %v778, 16
    %v850 = vpop.permute.xlu0 %849
    %851 = vrot.lane.b32.xlu0 %v779, 16
    %v852 = vpop.permute.xlu0 %851
    %v853 = vsel %vm208, %v836, %v838
    %v854 = vsel %vm208, %v838, %v840
    %v855 = vsel %vm208, %v842, %v844
    %v856 = vsel %vm208, %v844, %v846
    %v857 = vsel %vm208, %v848, %v850
    %v858 = vsel %vm208, %v850, %v852
    %v865 = vsel %vm138, %v780, 0
    %867 = vmatpush.msra.mxu0 0.0
    %868 = vmatpush.msra.mxu0 0.0
    %869 = vmatpush.msra.mxu0 0.0
    %870 = vmatpush.msra.mxu0 0.0
    %871 = vmatpush.msra.mxu0 0.0
    %872 = vmatpush.msra.mxu0 0.0
    %873 = vmatpush.msra.mxu0 0.0
    %874 = vmatpush.msra.mxu0 0.0
    %875 = vmatpush.msra.mxu0 0.0
    %876 = vmatpush.msra.mxu0 0.0
    %877 = vmatpush.msra.mxu0 0.0
    %878 = vmatpush.msra.mxu0 0.0
    %879 = vmatpush.msra.mxu0 0.0
    %880 = vmatpush.msra.mxu0 %v857
    %881 = vmatpush.msra.mxu0 %v855
    %882 = vmatpush.msra.mxu0 %v853
    %883 = vmatmul.f32.gmra.mxu0 %v865
    %v884 = vpop.f32.mrf.mxu0
    %v885 = vadd.f32 %v804, %v884
    %886 = vdwg.mxu0
    %887 = vmatpush.msra.mxu0 0.0
    %888 = vmatpush.msra.mxu0 0.0
    %889 = vmatpush.msra.mxu0 0.0
    %890 = vmatpush.msra.mxu0 0.0
    %891 = vmatpush.msra.mxu0 0.0
    %892 = vmatpush.msra.mxu0 0.0
    %893 = vmatpush.msra.mxu0 0.0
    %894 = vmatpush.msra.mxu0 0.0
    %895 = vmatpush.msra.mxu0 0.0
    %896 = vmatpush.msra.mxu0 0.0
    %897 = vmatpush.msra.mxu0 0.0
    %898 = vmatpush.msra.mxu0 0.0
    %899 = vmatpush.msra.mxu0 0.0
    %900 = vmatpush.msra.mxu0 %v858
    %901 = vmatpush.msra.mxu0 %v856
    %902 = vmatpush.msra.mxu0 %v854
    %903 = vmatmul.f32.gmra.mxu0 %v865
    %v904 = vpop.f32.mrf.mxu0
    %v905 = vadd.f32 %v824, %v904
    %906 = vdwg.mxu0
    %v907 = vld [vmem:[#allocation2 + $0x8] sm:$0xff]
    %v908 = vld [vmem:[#allocation2 + $0x10] sm:$0xff]
    %v909 = vld [vmem:[#allocation2 + $0x18] sm:$0xff]
    %v910 = vld [vmem:[#allocation2 + $0x28] sm:$0xff]
    %v911 = vld [vmem:[#allocation2 + $0x30] sm:$0xff]
    %v912 = vld [vmem:[#allocation2 + $0x38] sm:$0xff]
    %v913 = vld [vmem:[#allocation2 + $0x48] sm:$0xff]
    %v914 = vld [vmem:[#allocation2 + $0x50] sm:$0xff]
    %v915 = vld [vmem:[#allocation2 + $0x58] sm:$0xff]
    %916 = vrot.lane.b32.xlu0 %v780, 80
    %v917 = vpop.permute.xlu0 %916
    %927 = vrot.lane.b32.xlu0 %v907, 112
    %v928 = vpop.permute.xlu0 %927
    %929 = vrot.lane.b32.xlu0 %v908, 112
    %v930 = vpop.permute.xlu0 %929
    %931 = vrot.lane.b32.xlu0 %v909, 112
    %v932 = vpop.permute.xlu0 %931
    %933 = vrot.lane.b32.xlu0 %v910, 112
    %v934 = vpop.permute.xlu0 %933
    %935 = vrot.lane.b32.xlu0 %v911, 112
    %v936 = vpop.permute.xlu0 %935
    %937 = vrot.lane.b32.xlu0 %v912, 112
    %v938 = vpop.permute.xlu0 %937
    %939 = vrot.lane.b32.xlu0 %v913, 112
    %v940 = vpop.permute.xlu0 %939
    %941 = vrot.lane.b32.xlu0 %v914, 112
    %v942 = vpop.permute.xlu0 %941
    %943 = vrot.lane.b32.xlu0 %v915, 112
    %v944 = vpop.permute.xlu0 %943
    %v945 = vsel %vm301, %v928, %v930
    %v946 = vsel %vm301, %v930, %v932
    %v947 = vsel %vm301, %v934, %v936
    %v948 = vsel %vm301, %v936, %v938
    %v949 = vsel %vm301, %v940, %v942
    %v950 = vsel %vm301, %v942, %v944
    %v957 = vsel %vm138, %v917, 0
    %959 = vmatpush.msra.mxu0 0.0
    %960 = vmatpush.msra.mxu0 0.0
    %961 = vmatpush.msra.mxu0 0.0
    %962 = vmatpush.msra.mxu0 0.0
    %963 = vmatpush.msra.mxu0 0.0
    %964 = vmatpush.msra.mxu0 0.0
    %965 = vmatpush.msra.mxu0 0.0
    %966 = vmatpush.msra.mxu0 0.0
    %967 = vmatpush.msra.mxu0 0.0
    %968 = vmatpush.msra.mxu0 0.0
    %969 = vmatpush.msra.mxu0 0.0
    %970 = vmatpush.msra.mxu0 0.0
    %971 = vmatpush.msra.mxu0 0.0
    %972 = vmatpush.msra.mxu0 %v949
    %973 = vmatpush.msra.mxu0 %v947
    %974 = vmatpush.msra.mxu0 %v945
    %975 = vmatmul.f32.gmra.mxu0 %v957
    %v976 = vpop.f32.mrf.mxu0
    %v977 = vadd.f32 0.0, %v976
    %978 = vdwg.mxu0
    %979 = vmatpush.msra.mxu0 0.0
    %980 = vmatpush.msra.mxu0 0.0
    %981 = vmatpush.msra.mxu0 0.0
    %982 = vmatpush.msra.mxu0 0.0
    %983 = vmatpush.msra.mxu0 0.0
    %984 = vmatpush.msra.mxu0 0.0
    %985 = vmatpush.msra.mxu0 0.0
    %986 = vmatpush.msra.mxu0 0.0
    %987 = vmatpush.msra.mxu0 0.0
    %988 = vmatpush.msra.mxu0 0.0
    %989 = vmatpush.msra.mxu0 0.0
    %990 = vmatpush.msra.mxu0 0.0
    %991 = vmatpush.msra.mxu0 0.0
    %992 = vmatpush.msra.mxu0 %v950
    %993 = vmatpush.msra.mxu0 %v948
    %994 = vmatpush.msra.mxu0 %v946
    %995 = vmatmul.f32.gmra.mxu0 %v957
    %v996 = vpop.f32.mrf.mxu0
    %v997 = vadd.f32 0.0, %v996
    %998 = vdwg.mxu0
    %v999 = vadd.f32 %v885, %v977
    %v1000 = vadd.f32 %v905, %v997
    %v1001 = vadd.f32 %v999, %v1000
    %1002 = vadd.xlane.f32.xlu0 %v1001
    %v1003 = vpop.xlane.xlu0 %1002
    %v1004 = vmul.f32 %v1003, 0.00390625
    %v1005 = vmul.f32 %v999, %v999
    %v1006 = vmul.f32 %v1000, %v1000
    %v1007 = vadd.f32 %v1005, %v1006
    %1008 = vadd.xlane.f32.xlu0 %v1007
    %v1009 = vpop.xlane.xlu0 %1008
    %v1010 = vmul.f32 %v1009, 0.00390625
    %v1011 = vmul.f32 %v1004, %v1004
    %v1012 = vsub.f32 %v1010, %v1011
    %v1013 = vld [vmem:[%s3] sm:$0xff]
    %v1014 = vadd.f32 %v1012, 1e-05
    %v1015 = vrsqrt.pop %v1014
    %v1016 = vmul.f32 %v1015, %v1014
    %v1017 = vmul.f32 %v1016, %v1015
    %v1018 = vmul.f32 0.5, %v1017
    %v1019 = vsub.f32 1.5, %v1018
    %v1020 = vmul.f32 %v1015, %v1019
    %vm1021 = vweird.f32 %v1014
    %vm1022 = vweird.f32 %v1015
    %vm1023 = vmor %vm1021, %vm1022
    %v1024 = vsel %vm1023, %v1015, %v1020
    %v1025 = vmul.f32 %v1013, %v1024
    %v1026 = vld [vmem:[%s4] sm:$0xff]
    %v1027 = vmul.f32 %v1004, %v1025
    %v1028 = vsub.f32 %v1026, %v1027
    %1030 = vset.pattern.permute.xlu0 0
    %1031 = vperm.xlu0 %1030, %v1025
    %v1032 = vpop.permute.xlu0 %1031
    %v1034 = vmul.f32 %v999, %v1032
    %v1035 = vmul.f32 %v1000, %v1032
    %1037 = vset.pattern.permute.xlu0 0
    %1038 = vperm.xlu0 %1037, %v1028
    %v1039 = vpop.permute.xlu0 %1038
    %v1041 = vadd.f32 %v1034, %v1039
    %v1042 = vadd.f32 %v1035, %v1039
    %v1043 = vmax.f32 %v1041, 0.0
    %v1044 = vmax.f32 %v1042, 0.0
    %1045 = vst [vmem:[#allocation2 + $0x28] sm:$0xff] %v1043
    %1046 = vst [vmem:[#allocation2 + $0x30] sm:$0xff] %v1044
    %v1047 = vld [vmem:[#allocation2 + $0x20] sm:$0xff]
    %v1048 = vld [vmem:[#allocation2 + $0x28] sm:$0xff]
    %v1049 = vld [vmem:[#allocation2 + $0x30] sm:$0xff]
    %v1050 = vmul.f32 %v1047, %v66
    %v1051 = vmul.f32 %v1048, %v70
    %v1052 = vmul.f32 %v1049, %v68
    %1056 = vrot.lane.b32.xlu0 %v1050, 1
    %v1057 = vpop.permute.xlu0 %1056
    %1058 = vrot.lane.b32.xlu0 %v1051, 1
    %v1059 = vpop.permute.xlu0 %1058
    %1060 = vrot.lane.b32.xlu0 %v1052, 1
    %v1061 = vpop.permute.xlu0 %1060
    %v1062 = vsel %vm86, %v1057, %v1059
    %v1063 = vsel %vm86, %v1059, %v1061
    %1066 = vst [vmem:[#allocation2 + $0x8] sm:$0xff] %v1062
    %1067 = vst [vmem:[#allocation2 + $0x10] sm:$0xff] %v1063
    %v1068 = vld [vmem:[#allocation2 + $0x28] sm:$0xff]
    %v1069 = vld [vmem:[#allocation2 + $0x30] sm:$0xff]
    %v1070 = vld [vmem:[#allocation2 + $0x38] sm:$0xff]
    %v1071 = vmul.f32 %v1068, %v100
    %v1072 = vmul.f32 %v1069, %v103
    %v1073 = vmul.f32 %v1070, %v102
    %1077 = vrot.lane.b32.xlu0 %v1071, 127
    %v1078 = vpop.permute.xlu0 %1077
    %1079 = vrot.lane.b32.xlu0 %v1072, 127
    %v1080 = vpop.permute.xlu0 %1079
    %1081 = vrot.lane.b32.xlu0 %v1073, 127
    %v1082 = vpop.permute.xlu0 %1081
    %v1083 = vsel %vm69, %v1078, %v1080
    %v1084 = vsel %vm69, %v1080, %v1082
    %1087 = vst [vmem:[#allocation2 + $0x48] sm:$0xff] %v1083
    %1088 = vst [vmem:[#allocation2 + $0x50] sm:$0xff] %v1084
    %v1089 = vld [vmem:[#allocation2] sm:$0xff]
    %v1090 = vld [vmem:[#allocation2 + $0x8] sm:$0xff]
    %v1091 = vld [vmem:[#allocation2 + $0x10] sm:$0xff]
    %v1092 = vld [vmem:[#allocation2 + $0x20] sm:$0xff]
    %v1093 = vld [vmem:[#allocation2 + $0x28] sm:$0xff]
    %v1094 = vld [vmem:[#allocation2 + $0x30] sm:$0xff]
    %v1095 = vld [vmem:[#allocation2 + $0x40] sm:$0xff]
    %v1096 = vld [vmem:[#allocation2 + $0x48] sm:$0xff]
    %v1097 = vld [vmem:[#allocation2 + $0x50] sm:$0xff]
    %v1098 = vld [vmem:[%s2] sm:$0xff]
    %1100 = vrot.lane.b32.xlu0 %v1098, 104
    %v1101 = vpop.permute.xlu0 %1100
    %v1102 = vsel %vm138, %v1101, 0
    %1104 = vmatpush.msra.mxu0 0.0
    %1105 = vmatpush.msra.mxu0 0.0
    %1106 = vmatpush.msra.mxu0 0.0
    %1107 = vmatpush.msra.mxu0 0.0
    %1108 = vmatpush.msra.mxu0 0.0
    %1109 = vmatpush.msra.mxu0 0.0
    %1110 = vmatpush.msra.mxu0 0.0
    %1111 = vmatpush.msra.mxu0 0.0
    %1112 = vmatpush.msra.mxu0 0.0
    %1113 = vmatpush.msra.mxu0 0.0
    %1114 = vmatpush.msra.mxu0 0.0
    %1115 = vmatpush.msra.mxu0 0.0
    %1116 = vmatpush.msra.mxu0 0.0
    %1117 = vmatpush.msra.mxu0 %v1096
    %1118 = vmatpush.msra.mxu0 %v1093
    %1119 = vmatpush.msra.mxu0 %v1090
    %1120 = vmatmul.f32.gmra.mxu0 %v1102
    %v1121 = vpop.f32.mrf.mxu0
    %v1122 = vadd.f32 0.0, %v1121
    %1123 = vdwg.mxu0
    %1124 = vmatpush.msra.mxu0 0.0
    %1125 = vmatpush.msra.mxu0 0.0
    %1126 = vmatpush.msra.mxu0 0.0
    %1127 = vmatpush.msra.mxu0 0.0
    %1128 = vmatpush.msra.mxu0 0.0
    %1129 = vmatpush.msra.mxu0 0.0
    %1130 = vmatpush.msra.mxu0 0.0
    %1131 = vmatpush.msra.mxu0 0.0
    %1132 = vmatpush.msra.mxu0 0.0
    %1133 = vmatpush.msra.mxu0 0.0
    %1134 = vmatpush.msra.mxu0 0.0
    %1135 = vmatpush.msra.mxu0 0.0
    %1136 = vmatpush.msra.mxu0 0.0
    %1137 = vmatpush.msra.mxu0 %v1097
    %1138 = vmatpush.msra.mxu0 %v1094
    %1139 = vmatpush.msra.mxu0 %v1091
    %1140 = vmatmul.f32.gmra.mxu0 %v1102
    %v1141 = vpop.f32.mrf.mxu0
    %v1142 = vadd.f32 0.0, %v1141
    %1143 = vdwg.mxu0
    %1153 = vrot.lane.b32.xlu0 %v1089, 16
    %v1154 = vpop.permute.xlu0 %1153
    %1155 = vrot.lane.b32.xlu0 %v1090, 16
    %v1156 = vpop.permute.xlu0 %1155
    %1157 = vrot.lane.b32.xlu0 %v1091, 16
    %v1158 = vpop.permute.xlu0 %1157
    %1159 = vrot.lane.b32.xlu0 %v1092, 16
    %v1160 = vpop.permute.xlu0 %1159
    %1161 = vrot.lane.b32.xlu0 %v1093, 16
    %v1162 = vpop.permute.xlu0 %1161
    %1163 = vrot.lane.b32.xlu0 %v1094, 16
    %v1164 = vpop.permute.xlu0 %1163
    %1165 = vrot.lane.b32.xlu0 %v1095, 16
    %v1166 = vpop.permute.xlu0 %1165
    %1167 = vrot.lane.b32.xlu0 %v1096, 16
    %v1168 = vpop.permute.xlu0 %1167
    %1169 = vrot.lane.b32.xlu0 %v1097, 16
    %v1170 = vpop.permute.xlu0 %1169
    %v1171 = vsel %vm208, %v1154, %v1156
    %v1172 = vsel %vm208, %v1156, %v1158
    %v1173 = vsel %vm208, %v1160, %v1162
    %v1174 = vsel %vm208, %v1162, %v1164
    %v1175 = vsel %vm208, %v1166, %v1168
    %v1176 = vsel %vm208, %v1168, %v1170
    %v1183 = vsel %vm138, %v1098, 0
    %1185 = vmatpush.msra.mxu0 0.0
    %1186 = vmatpush.msra.mxu0 0.0
    %1187 = vmatpush.msra.mxu0 0.0
    %1188 = vmatpush.msra.mxu0 0.0
    %1189 = vmatpush.msra.mxu0 0.0
    %1190 = vmatpush.msra.mxu0 0.0
    %1191 = vmatpush.msra.mxu0 0.0
    %1192 = vmatpush.msra.mxu0 0.0
    %1193 = vmatpush.msra.mxu0 0.0
    %1194 = vmatpush.msra.mxu0 0.0
    %1195 = vmatpush.msra.mxu0 0.0
    %1196 = vmatpush.msra.mxu0 0.0
    %1197 = vmatpush.msra.mxu0 0.0
    %1198 = vmatpush.msra.mxu0 %v1175
    %1199 = vmatpush.msra.mxu0 %v1173
    %1200 = vmatpush.msra.mxu0 %v1171
    %1201 = vmatmul.f32.gmra.mxu0 %v1183
    %v1202 = vpop.f32.mrf.mxu0
    %v1203 = vadd.f32 %v1122, %v1202
    %1204 = vdwg.mxu0
    %1205 = vmatpush.msra.mxu0 0.0
    %1206 = vmatpush.msra.mxu0 0.0
    %1207 = vmatpush.msra.mxu0 0.0
    %1208 = vmatpush.msra.mxu0 0.0
    %1209 = vmatpush.msra.mxu0 0.0
    %1210 = vmatpush.msra.mxu0 0.0
    %1211 = vmatpush.msra.mxu0 0.0
    %1212 = vmatpush.msra.mxu0 0.0
    %1213 = vmatpush.msra.mxu0 0.0
    %1214 = vmatpush.msra.mxu0 0.0
    %1215 = vmatpush.msra.mxu0 0.0
    %1216 = vmatpush.msra.mxu0 0.0
    %1217 = vmatpush.msra.mxu0 0.0
    %1218 = vmatpush.msra.mxu0 %v1176
    %1219 = vmatpush.msra.mxu0 %v1174
    %1220 = vmatpush.msra.mxu0 %v1172
    %1221 = vmatmul.f32.gmra.mxu0 %v1183
    %v1222 = vpop.f32.mrf.mxu0
    %v1223 = vadd.f32 %v1142, %v1222
    %1224 = vdwg.mxu0
    %v1225 = vld [vmem:[#allocation2 + $0x8] sm:$0xff]
    %v1226 = vld [vmem:[#allocation2 + $0x10] sm:$0xff]
    %v1227 = vld [vmem:[#allocation2 + $0x18] sm:$0xff]
    %v1228 = vld [vmem:[#allocation2 + $0x28] sm:$0xff]
    %v1229 = vld [vmem:[#allocation2 + $0x30] sm:$0xff]
    %v1230 = vld [vmem:[#allocation2 + $0x38] sm:$0xff]
    %v1231 = vld [vmem:[#allocation2 + $0x48] sm:$0xff]
    %v1232 = vld [vmem:[#allocation2 + $0x50] sm:$0xff]
    %v1233 = vld [vmem:[#allocation2 + $0x58] sm:$0xff]
    %1234 = vrot.lane.b32.xlu0 %v1098, 80
    %v1235 = vpop.permute.xlu0 %1234
    %1245 = vrot.lane.b32.xlu0 %v1225, 112
    %v1246 = vpop.permute.xlu0 %1245
    %1247 = vrot.lane.b32.xlu0 %v1226, 112
    %v1248 = vpop.permute.xlu0 %1247
    %1249 = vrot.lane.b32.xlu0 %v1227, 112
    %v1250 = vpop.permute.xlu0 %1249
    %1251 = vrot.lane.b32.xlu0 %v1228, 112
    %v1252 = vpop.permute.xlu0 %1251
    %1253 = vrot.lane.b32.xlu0 %v1229, 112
    %v1254 = vpop.permute.xlu0 %1253
    %1255 = vrot.lane.b32.xlu0 %v1230, 112
    %v1256 = vpop.permute.xlu0 %1255
    %1257 = vrot.lane.b32.xlu0 %v1231, 112
    %v1258 = vpop.permute.xlu0 %1257
    %1259 = vrot.lane.b32.xlu0 %v1232, 112
    %v1260 = vpop.permute.xlu0 %1259
    %1261 = vrot.lane.b32.xlu0 %v1233, 112
    %v1262 = vpop.permute.xlu0 %1261
    %v1263 = vsel %vm301, %v1246, %v1248
    %v1264 = vsel %vm301, %v1248, %v1250
    %v1265 = vsel %vm301, %v1252, %v1254
    %v1266 = vsel %vm301, %v1254, %v1256
    %v1267 = vsel %vm301, %v1258, %v1260
    %v1268 = vsel %vm301, %v1260, %v1262
    %v1275 = vsel %vm138, %v1235, 0
    %1277 = vmatpush.msra.mxu0 0.0
    %1278 = vmatpush.msra.mxu0 0.0
    %1279 = vmatpush.msra.mxu0 0.0
    %1280 = vmatpush.msra.mxu0 0.0
    %1281 = vmatpush.msra.mxu0 0.0
    %1282 = vmatpush.msra.mxu0 0.0
    %1283 = vmatpush.msra.mxu0 0.0
    %1284 = vmatpush.msra.mxu0 0.0
    %1285 = vmatpush.msra.mxu0 0.0
    %1286 = vmatpush.msra.mxu0 0.0
    %1287 = vmatpush.msra.mxu0 0.0
    %1288 = vmatpush.msra.mxu0 0.0
    %1289 = vmatpush.msra.mxu0 0.0
    %1290 = vmatpush.msra.mxu0 %v1267
    %1291 = vmatpush.msra.mxu0 %v1265
    %1292 = vmatpush.msra.mxu0 %v1263
    %1293 = vmatmul.f32.gmra.mxu0 %v1275
    %v1294 = vpop.f32.mrf.mxu0
    %v1295 = vadd.f32 0.0, %v1294
    %1296 = vdwg.mxu0
    %1297 = vmatpush.msra.mxu0 0.0
    %1298 = vmatpush.msra.mxu0 0.0
    %1299 = vmatpush.msra.mxu0 0.0
    %1300 = vmatpush.msra.mxu0 0.0
    %1301 = vmatpush.msra.mxu0 0.0
    %1302 = vmatpush.msra.mxu0 0.0
    %1303 = vmatpush.msra.mxu0 0.0
    %1304 = vmatpush.msra.mxu0 0.0
    %1305 = vmatpush.msra.mxu0 0.0
    %1306 = vmatpush.msra.mxu0 0.0
    %1307 = vmatpush.msra.mxu0 0.0
    %1308 = vmatpush.msra.mxu0 0.0
    %1309 = vmatpush.msra.mxu0 0.0
    %1310 = vmatpush.msra.mxu0 %v1268
    %1311 = vmatpush.msra.mxu0 %v1266
    %1312 = vmatpush.msra.mxu0 %v1264
    %1313 = vmatmul.f32.gmra.mxu0 %v1275
    %v1314 = vpop.f32.mrf.mxu0
    %v1315 = vadd.f32 0.0, %v1314
    %1316 = vdwg.mxu0
    %v1317 = vadd.f32 %v1203, %v1295
    %v1318 = vadd.f32 %v1223, %v1315
    %v1319 = vadd.f32 %v1317, %v1318
    %1320 = vadd.xlane.f32.xlu0 %v1319
    %v1321 = vpop.xlane.xlu0 %1320
    %v1322 = vmul.f32 %v1321, 0.00390625
    %v1323 = vmul.f32 %v1317, %v1317
    %v1324 = vmul.f32 %v1318, %v1318
    %v1325 = vadd.f32 %v1323, %v1324
    %1326 = vadd.xlane.f32.xlu0 %v1325
    %v1327 = vpop.xlane.xlu0 %1326
    %v1328 = vmul.f32 %v1327, 0.00390625
    %v1329 = vmul.f32 %v1322, %v1322
    %v1330 = vsub.f32 %v1328, %v1329
    %v1331 = vld [vmem:[%s5] sm:$0xff]
    %v1332 = vadd.f32 %v1330, 1e-05
    %v1333 = vrsqrt.pop %v1332
    %v1334 = vmul.f32 %v1333, %v1332
    %v1335 = vmul.f32 %v1334, %v1333
    %v1336 = vmul.f32 0.5, %v1335
    %v1337 = vsub.f32 1.5, %v1336
    %v1338 = vmul.f32 %v1333, %v1337
    %vm1339 = vweird.f32 %v1332
    %vm1340 = vweird.f32 %v1333
    %vm1341 = vmor %vm1339, %vm1340
    %v1342 = vsel %vm1341, %v1333, %v1338
    %v1343 = vmul.f32 %v1331, %v1342
    %v1344 = vld [vmem:[%s6] sm:$0xff]
    %v1345 = vmul.f32 %v1322, %v1343
    %v1346 = vsub.f32 %v1344, %v1345
    %1348 = vset.pattern.permute.xlu0 0
    %1349 = vperm.xlu0 %1348, %v1343
    %v1350 = vpop.permute.xlu0 %1349
    %v1352 = vmul.f32 %v1317, %v1350
    %v1353 = vmul.f32 %v1318, %v1350
    %1355 = vset.pattern.permute.xlu0 0
    %1356 = vperm.xlu0 %1355, %v1346
    %v1357 = vpop.permute.xlu0 %1356
    %v1359 = vadd.f32 %v1352, %v1357
    %v1360 = vadd.f32 %v1353, %v1357
    %v1361 = vld [vmem:[%s724] sm:$0xff]
    %v1362 = vld [vmem:[%s724 + $0x8] sm:$0xff]
    %v1363 = vadd.f32 %v1361, %v1359
    %v1364 = vadd.f32 %v1362, %v1360
    %s1365 = scalar_lea.vmem [#allocation6], 16
    %1366 = vst [vmem:[%s1365] sm:$0xff] %v1363
    %1367 = vst [vmem:[%s1365 + $0x8] sm:$0xff] %v1364
    // Predicated region
    $region38: #{tpu_custom_call.1} parent=1 // pred_check
      _
    $region39: #{tpu_custom_call.1} parent=1 // pred_check_branch
      %1369 = sbr.rel (0) target = $region41
    $region40: #{tpu_custom_call.1} parent=1 // pred_region
      %1371 = vsyncadd [#allocation5], 0
      %s1372 = sshll.u32 [#allocation6], 4
      %s1373 = int_to_ptr.vmem [resolvable:$true] %s1372
      %s1374 = sshll.u32 %s8, 4
      %s1375 = int_to_ptr.hbm [resolvable:$true] %s1374
      %1380 = dma.vmem_to_hbm [thread:$0]  %s1373, 512, %s1375, [#allocation5], 256, 256, 16
    $region41: #{tpu_custom_call.1} parent=1 // pred_fallthru
      _
    // Predicated region
    $region42: #{tpu_custom_call.1} parent=1 // pred_check
      _
    $region43: #{tpu_custom_call.1} parent=1 // pred_check_branch
      %1382 = sbr.rel (0) target = $region45
    $region44: #{tpu_custom_call.1} parent=1 // pred_region
      %1384 = dma.done [#allocation5], 512
    $region45: #{tpu_custom_call.1} parent=1 // pred_fallthru
      _
    %1385 = vsyncpa [#allocation4], 1
    %1386 = vsyncpa [#allocation5], 1

</llo_original>
